<compile_context>
chip_gen: v7x
topology: tpu7x:2x2x1
jax: 0.10.0
libtpu: 0.0.40
codegen_flags: <defaults>
</compile_context>

<pallas_src>
import math
import jax
import jax.numpy as jnp
from jax.experimental import pallas as pl
from jax.experimental.pallas import tpu as pltpu  # noqa: F401

# ----------------------- small config consistent with the module ---------------
B = 2          # batch
SEQ = 16       # sequence length (number of tokens)
HID = 32       # config.hidden_size
NH = 4         # config.n_heads
HD = HID // NH # attention_head_size


# --------------------------------- Pallas kernel --------------------------------
def _mha_kernel(x_ref, wqkv_ref, wo_ref, bqkv_ref, bo_ref, o_ref):
    # x_ref    : (B*SEQ, HID)   bf16
    # wqkv_ref : (HID, 3*HID)   bf16   packed [Wq | Wk | Wv]
    # wo_ref   : (HID, HID)     bf16
    # bqkv_ref : (1, 3*HID)     f32    packed [bq | bk | bv]
    # bo_ref   : (1, HID)       f32
    # o_ref    : (B*SEQ, HID)   f32
    x = x_ref[...]

    # Fused QKV projection over the whole token slab: one MXU matmul,
    # bf16 operands, f32 accumulation.
    qkv = jnp.dot(x, wqkv_ref[...], preferred_element_type=jnp.float32) \
        + bqkv_ref[...]

    scale = 1.0 / math.sqrt(HD)
    # One lane slice per tensor (not per head/batch), then a free leading-dim
    # split to a batched-over-B layout so both attention matmuls are batched
    # dot_generals on the MXU.
    q = (qkv[:, 0 * HID:1 * HID] * scale).reshape(B, SEQ, HID).astype(jnp.bfloat16)
    k = qkv[:, 1 * HID:2 * HID].reshape(B, SEQ, HID).astype(jnp.bfloat16)
    v = qkv[:, 2 * HID:3 * HID].reshape(B, SEQ, HID).astype(jnp.bfloat16)

    wo = wo_ref[...]  # (HID, HID) bf16, loaded once

    # Output projection as per-head accumulation: ctx @ Wo == sum_h ctx_h @ Wo_h,
    # so no (lane-shuffling) concatenation of head contexts is needed.
    out = jnp.zeros((B * SEQ, HID), jnp.float32)
    for h in range(NH):
        lo, hi = h * HD, (h + 1) * HD
        qh = q[:, :, lo:hi]                 # (B, SEQ, HD)
        kh = k[:, :, lo:hi]
        vh = v[:, :, lo:hi]

        # scores: batched over B, f32 accumulate on the MXU
        s = jnp.einsum("bqd,bkd->bqk", qh, kh,
                       preferred_element_type=jnp.float32)       # (B, SEQ, SEQ)

        # numerically stable softmax, kept in f32 (no bf16 VPU/EUP on v5e)
        s = s - jnp.max(s, axis=-1, keepdims=True)
        e = jnp.exp(s)
        inv = pl.reciprocal(jnp.sum(e, axis=-1, keepdims=True), approx=True)
        p = (e * inv).astype(jnp.bfloat16)
        # TODO(synk): attn_dropout / proj_dropout are identity (eval-mode semantics).

        ctx_h = jnp.einsum("bqk,bkd->bqd", p, vh,
                           preferred_element_type=jnp.float32)   # (B, SEQ, HD)

        # Wo[lo:hi, :] is a cheap sublane (row) slice; MXU accumulates in f32.
        out = out + jnp.dot(ctx_h.reshape(B * SEQ, HD).astype(jnp.bfloat16),
                            wo[lo:hi, :],
                            preferred_element_type=jnp.float32)

    o_ref[...] = out + bo_ref[...]


# ----------------------------------- wrapper -------------------------------------
def attention_forward(hidden_states, params, vis=False):
    """hidden_states: (B, SEQ, HID) f32. Returns (attention_output, weights)."""
    b_, s_, hid = hidden_states.shape
    n_tok = b_ * s_
    x2 = hidden_states.reshape(n_tok, hid).astype(jnp.bfloat16)

    # advisory scheduling hint for XLA around the custom call
    flops = (2 * n_tok * hid * (3 * hid)                 # fused QKV projection
             + 2 * (2 * b_ * NH * s_ * s_ * HD)          # scores + probs @ V
             + 2 * n_tok * hid * hid)                    # output projection
    transcendentals = b_ * NH * s_ * s_ + b_ * NH * s_   # exp + approx reciprocal
    bytes_accessed = (x2.size * 2
                      + params["w_qkv"].size * 2 + params["w_o"].size * 2
                      + params["b_qkv"].size * 4 + params["b_o"].size * 4
                      + n_tok * hid * 4)

    out = pl.pallas_call(
        _mha_kernel,
        out_shape=jax.ShapeDtypeStruct((n_tok, hid), jnp.float32),
        cost_estimate=pl.CostEstimate(flops=flops,
                                      transcendentals=transcendentals,
                                      bytes_accessed=bytes_accessed),
    )(x2, params["w_qkv"], params["w_o"], params["b_qkv"], params["b_o"])

    out = out.reshape(b_, s_, hid)
    # vis=False -> weights is None (matches the torch module).
    # TODO(synk): vis=True (returning attention_probs) not emitted from the kernel.
    weights = None
    return out, weights


# ----------------------------- pure-JAX reference --------------------------------
def attention_reference(x, params):
    q = x @ params["wq"] + params["bq"]
    k = x @ params["wk"] + params["bk"]
    v = x @ params["wv"] + params["bv"]
    b_, s_, _ = x.shape
    q = q.reshape(b_, s_, NH, HD).transpose(0, 2, 1, 3)
    k = k.reshape(b_, s_, NH, HD).transpose(0, 2, 1, 3)
    v = v.reshape(b_, s_, NH, HD).transpose(0, 2, 1, 3)
    s = jnp.einsum("bhqd,bhkd->bhqk", q, k) / math.sqrt(HD)
    p = jax.nn.softmax(s, axis=-1)
    c = jnp.einsum("bhqk,bhkd->bhqd", p, v)
    c = c.transpose(0, 2, 1, 3).reshape(b_, s_, HID)
    return c @ params["wo"] + params["bo"]


# -------------------------- deterministic parameter init -------------------------
def init_params(key):
    ks = jax.random.split(key, 8)

    def dense(kw, kb, fi, fo, scale=0.05):
        w = scale * jax.random.normal(kw, (fi, fo), jnp.float32)
        b = scale * jax.random.normal(kb, (1, fo), jnp.float32)
        return w, b

    wq, bq = dense(ks[0], ks[1], HID, HID)
    wk, bk = dense(ks[2], ks[3], HID, HID)
    wv, bv = dense(ks[4], ks[5], HID, HID)
    wo, bo = dense(ks[6], ks[7], HID, HID)
    return dict(
        # packed tensors consumed by the kernel (bf16 MXU operands, f32 biases)
        w_qkv=jnp.concatenate([wq, wk, wv], axis=1).astype(jnp.bfloat16),  # (HID, 3*HID)
        w_o=wo.astype(jnp.bfloat16),                                       # (HID, HID)
        b_qkv=jnp.concatenate([bq, bk, bv], axis=1),                       # (1, 3*HID)
        b_o=bo,                                                            # (1, HID)
        # unpacked f32 copies kept only for the reference check
        wq=wq, bq=bq, wk=wk, bk=bk, wv=wv, bv=bv, wo=wo, bo=bo,
    )


if __name__ == "__main__":
    key = jax.random.PRNGKey(0)
    kx, kp = jax.random.split(key)
    x = jax.random.normal(kx, (B, SEQ, HID), jnp.float32)
    params = init_params(kp)

    out, weights = attention_forward(x, params)
    out = jax.block_until_ready(out)

    assert out.shape == (B, SEQ, HID)
    assert weights is None
    assert bool(jnp.all(jnp.isfinite(out)))

    ref = attention_reference(x, params)
    # tolerance covers bf16 MXU operands + pl.reciprocal(approx=True)
    assert bool(jnp.allclose(out, ref, rtol=1e-2, atol=1e-2))

    print("KERNEL_OK")
</pallas_src>

<mosaic_0001>
module attributes {stable_mosaic.version = 11 : i64} {
  func.func @_mha_kernel(%arg0: memref<32x32xbf16, #tpu.memory_space<vmem>>, %arg1: memref<32x96xbf16, #tpu.memory_space<vmem>>, %arg2: memref<32x32xbf16, #tpu.memory_space<vmem>>, %arg3: memref<1x96xf32, #tpu.memory_space<vmem>>, %arg4: memref<1x32xf32, #tpu.memory_space<vmem>>, %arg5: memref<32x32xf32, #tpu.memory_space<vmem>>) attributes {dimension_semantics = [], scalar_prefetch = 0 : i64, scratch_operands = 0 : i64, tpu.core_type = #tpu.core_type<tc>} {
    %c0 = arith.constant 0 : index
    %c0_0 = arith.constant 0 : index
    %0 = vector.load %arg0[%c0, %c0_0] : memref<32x32xbf16, #tpu.memory_space<vmem>>, vector<32x32xbf16>
    %c0_1 = arith.constant 0 : index
    %c0_2 = arith.constant 0 : index
    %1 = vector.load %arg1[%c0_1, %c0_2] : memref<32x96xbf16, #tpu.memory_space<vmem>>, vector<32x96xbf16>
    %cst = arith.constant dense<0.000000e+00> : vector<32x96xf32>
    %2 = tpu.matmul %0, %1, %cst {dimension_numbers = #tpu.dot_dimension_numbers<[1], [0], [0], [1], [0, 0, 1, 1], [], []>} : vector<32x32xbf16>, vector<32x96xbf16>, vector<32x96xf32> -> vector<32x96xf32>
    %c0_3 = arith.constant 0 : index
    %c0_4 = arith.constant 0 : index
    %3 = vector.load %arg3[%c0_3, %c0_4] : memref<1x96xf32, #tpu.memory_space<vmem>>, vector<1x96xf32>
    %4 = vector.broadcast %3 : vector<1x96xf32> to vector<32x96xf32>
    %5 = arith.addf %2, %4 : vector<32x96xf32>
    %6 = vector.extract_strided_slice %5 {offsets = [0, 0], sizes = [32, 32], strides = [1, 1]} : vector<32x96xf32> to vector<32x32xf32>
    %cst_5 = arith.constant 0.353553385 : f32
    %7 = vector.broadcast %cst_5 : f32 to vector<32x32xf32>
    %8 = arith.mulf %6, %7 : vector<32x32xf32>
    %9 = vector.shape_cast %8 : vector<32x32xf32> to vector<2x16x32xf32>
    %10 = arith.truncf %9 : vector<2x16x32xf32> to vector<2x16x32xbf16>
    %11 = vector.extract_strided_slice %5 {offsets = [0, 32], sizes = [32, 32], strides = [1, 1]} : vector<32x96xf32> to vector<32x32xf32>
    %12 = vector.shape_cast %11 : vector<32x32xf32> to vector<2x16x32xf32>
    %13 = arith.truncf %12 : vector<2x16x32xf32> to vector<2x16x32xbf16>
    %14 = vector.extract_strided_slice %5 {offsets = [0, 64], sizes = [32, 32], strides = [1, 1]} : vector<32x96xf32> to vector<32x32xf32>
    %15 = vector.shape_cast %14 : vector<32x32xf32> to vector<2x16x32xf32>
    %16 = arith.truncf %15 : vector<2x16x32xf32> to vector<2x16x32xbf16>
    %c0_6 = arith.constant 0 : index
    %c0_7 = arith.constant 0 : index
    %17 = vector.load %arg2[%c0_6, %c0_7] : memref<32x32xbf16, #tpu.memory_space<vmem>>, vector<32x32xbf16>
    %cst_8 = arith.constant 0.000000e+00 : f32
    %18 = vector.broadcast %cst_8 : f32 to vector<32x32xf32>
    %19 = vector.extract_strided_slice %10 {offsets = [0, 0, 0], sizes = [2, 16, 8], strides = [1, 1, 1]} : vector<2x16x32xbf16> to vector<2x16x8xbf16>
    %20 = vector.extract_strided_slice %13 {offsets = [0, 0, 0], sizes = [2, 16, 8], strides = [1, 1, 1]} : vector<2x16x32xbf16> to vector<2x16x8xbf16>
    %21 = vector.extract_strided_slice %16 {offsets = [0, 0, 0], sizes = [2, 16, 8], strides = [1, 1, 1]} : vector<2x16x32xbf16> to vector<2x16x8xbf16>
    "tpu.trace_start"() <{level = 10 : i32, message = "bqd,bkd->bqk"}> : () -> ()
    %cst_9 = arith.constant dense<0.000000e+00> : vector<2x16x16xf32>
    %22 = tpu.matmul %19, %20, %cst_9 {dimension_numbers = #tpu.dot_dimension_numbers<[2], [2], [1], [1], [0, 0, 0, 1, 1, 1], [0], [0]>} : vector<2x16x8xbf16>, vector<2x16x8xbf16>, vector<2x16x16xf32> -> vector<2x16x16xf32>
    "tpu.trace_stop"() : () -> ()
    %cst_10 = arith.constant dense<0xFF800000> : vector<2x16xf32>
    %23 = vector.multi_reduction <maximumf>, %22, %cst_10 [2] : vector<2x16x16xf32> to vector<2x16xf32>
    %24 = vector.shape_cast %23 : vector<2x16xf32> to vector<2x16x1xf32>
    %25 = vector.broadcast %24 : vector<2x16x1xf32> to vector<2x16x16xf32>
    %26 = arith.subf %22, %25 : vector<2x16x16xf32>
    %27 = math.exp %26 : vector<2x16x16xf32>
    %cst_11 = arith.constant dense<0.000000e+00> : vector<2x16xf32>
    %28 = vector.multi_reduction <add>, %27, %cst_11 [2] : vector<2x16x16xf32> to vector<2x16xf32>
    %29 = vector.shape_cast %28 : vector<2x16xf32> to vector<2x16x1xf32>
    %30 = tpu.reciprocal %29 {approx = true} : vector<2x16x1xf32> -> vector<2x16x1xf32>
    %31 = vector.broadcast %30 : vector<2x16x1xf32> to vector<2x16x16xf32>
    %32 = arith.mulf %27, %31 : vector<2x16x16xf32>
    %33 = arith.truncf %32 : vector<2x16x16xf32> to vector<2x16x16xbf16>
    "tpu.trace_start"() <{level = 10 : i32, message = "bqk,bkd->bqd"}> : () -> ()
    %cst_12 = arith.constant dense<0.000000e+00> : vector<2x16x8xf32>
    %34 = tpu.matmul %33, %21, %cst_12 {dimension_numbers = #tpu.dot_dimension_numbers<[2], [1], [1], [2], [0, 0, 0, 1, 1, 2], [0], [0]>} : vector<2x16x16xbf16>, vector<2x16x8xbf16>, vector<2x16x8xf32> -> vector<2x16x8xf32>
    "tpu.trace_stop"() : () -> ()
    %35 = vector.shape_cast %34 : vector<2x16x8xf32> to vector<32x8xf32>
    %36 = arith.truncf %35 : vector<32x8xf32> to vector<32x8xbf16>
    %37 = vector.extract_strided_slice %17 {offsets = [0, 0], sizes = [8, 32], strides = [1, 1]} : vector<32x32xbf16> to vector<8x32xbf16>
    %cst_13 = arith.constant dense<0.000000e+00> : vector<32x32xf32>
    %38 = tpu.matmul %36, %37, %cst_13 {dimension_numbers = #tpu.dot_dimension_numbers<[1], [0], [0], [1], [0, 0, 1, 1], [], []>} : vector<32x8xbf16>, vector<8x32xbf16>, vector<32x32xf32> -> vector<32x32xf32>
    %39 = arith.addf %18, %38 : vector<32x32xf32>
    %40 = vector.extract_strided_slice %10 {offsets = [0, 0, 8], sizes = [2, 16, 8], strides = [1, 1, 1]} : vector<2x16x32xbf16> to vector<2x16x8xbf16>
    %41 = vector.extract_strided_slice %13 {offsets = [0, 0, 8], sizes = [2, 16, 8], strides = [1, 1, 1]} : vector<2x16x32xbf16> to vector<2x16x8xbf16>
    %42 = vector.extract_strided_slice %16 {offsets = [0, 0, 8], sizes = [2, 16, 8], strides = [1, 1, 1]} : vector<2x16x32xbf16> to vector<2x16x8xbf16>
    "tpu.trace_start"() <{level = 10 : i32, message = "bqd,bkd->bqk"}> : () -> ()
    %cst_14 = arith.constant dense<0.000000e+00> : vector<2x16x16xf32>
    %43 = tpu.matmul %40, %41, %cst_14 {dimension_numbers = #tpu.dot_dimension_numbers<[2], [2], [1], [1], [0, 0, 0, 1, 1, 1], [0], [0]>} : vector<2x16x8xbf16>, vector<2x16x8xbf16>, vector<2x16x16xf32> -> vector<2x16x16xf32>
    "tpu.trace_stop"() : () -> ()
    %cst_15 = arith.constant dense<0xFF800000> : vector<2x16xf32>
    %44 = vector.multi_reduction <maximumf>, %43, %cst_15 [2] : vector<2x16x16xf32> to vector<2x16xf32>
    %45 = vector.shape_cast %44 : vector<2x16xf32> to vector<2x16x1xf32>
    %46 = vector.broadcast %45 : vector<2x16x1xf32> to vector<2x16x16xf32>
    %47 = arith.subf %43, %46 : vector<2x16x16xf32>
    %48 = math.exp %47 : vector<2x16x16xf32>
    %cst_16 = arith.constant dense<0.000000e+00> : vector<2x16xf32>
    %49 = vector.multi_reduction <add>, %48, %cst_16 [2] : vector<2x16x16xf32> to vector<2x16xf32>
    %50 = vector.shape_cast %49 : vector<2x16xf32> to vector<2x16x1xf32>
    %51 = tpu.reciprocal %50 {approx = true} : vector<2x16x1xf32> -> vector<2x16x1xf32>
    %52 = vector.broadcast %51 : vector<2x16x1xf32> to vector<2x16x16xf32>
    %53 = arith.mulf %48, %52 : vector<2x16x16xf32>
    %54 = arith.truncf %53 : vector<2x16x16xf32> to vector<2x16x16xbf16>
    "tpu.trace_start"() <{level = 10 : i32, message = "bqk,bkd->bqd"}> : () -> ()
    %cst_17 = arith.constant dense<0.000000e+00> : vector<2x16x8xf32>
    %55 = tpu.matmul %54, %42, %cst_17 {dimension_numbers = #tpu.dot_dimension_numbers<[2], [1], [1], [2], [0, 0, 0, 1, 1, 2], [0], [0]>} : vector<2x16x16xbf16>, vector<2x16x8xbf16>, vector<2x16x8xf32> -> vector<2x16x8xf32>
    "tpu.trace_stop"() : () -> ()
    %56 = vector.shape_cast %55 : vector<2x16x8xf32> to vector<32x8xf32>
    %57 = arith.truncf %56 : vector<32x8xf32> to vector<32x8xbf16>
    %58 = vector.extract_strided_slice %17 {offsets = [8, 0], sizes = [8, 32], strides = [1, 1]} : vector<32x32xbf16> to vector<8x32xbf16>
    %cst_18 = arith.constant dense<0.000000e+00> : vector<32x32xf32>
    %59 = tpu.matmul %57, %58, %cst_18 {dimension_numbers = #tpu.dot_dimension_numbers<[1], [0], [0], [1], [0, 0, 1, 1], [], []>} : vector<32x8xbf16>, vector<8x32xbf16>, vector<32x32xf32> -> vector<32x32xf32>
    %60 = arith.addf %39, %59 : vector<32x32xf32>
    %61 = vector.extract_strided_slice %10 {offsets = [0, 0, 16], sizes = [2, 16, 8], strides = [1, 1, 1]} : vector<2x16x32xbf16> to vector<2x16x8xbf16>
    %62 = vector.extract_strided_slice %13 {offsets = [0, 0, 16], sizes = [2, 16, 8], strides = [1, 1, 1]} : vector<2x16x32xbf16> to vector<2x16x8xbf16>
    %63 = vector.extract_strided_slice %16 {offsets = [0, 0, 16], sizes = [2, 16, 8], strides = [1, 1, 1]} : vector<2x16x32xbf16> to vector<2x16x8xbf16>
    "tpu.trace_start"() <{level = 10 : i32, message = "bqd,bkd->bqk"}> : () -> ()
    %cst_19 = arith.constant dense<0.000000e+00> : vector<2x16x16xf32>
    %64 = tpu.matmul %61, %62, %cst_19 {dimension_numbers = #tpu.dot_dimension_numbers<[2], [2], [1], [1], [0, 0, 0, 1, 1, 1], [0], [0]>} : vector<2x16x8xbf16>, vector<2x16x8xbf16>, vector<2x16x16xf32> -> vector<2x16x16xf32>
    "tpu.trace_stop"() : () -> ()
    %cst_20 = arith.constant dense<0xFF800000> : vector<2x16xf32>
    %65 = vector.multi_reduction <maximumf>, %64, %cst_20 [2] : vector<2x16x16xf32> to vector<2x16xf32>
    %66 = vector.shape_cast %65 : vector<2x16xf32> to vector<2x16x1xf32>
    %67 = vector.broadcast %66 : vector<2x16x1xf32> to vector<2x16x16xf32>
    %68 = arith.subf %64, %67 : vector<2x16x16xf32>
    %69 = math.exp %68 : vector<2x16x16xf32>
    %cst_21 = arith.constant dense<0.000000e+00> : vector<2x16xf32>
    %70 = vector.multi_reduction <add>, %69, %cst_21 [2] : vector<2x16x16xf32> to vector<2x16xf32>
    %71 = vector.shape_cast %70 : vector<2x16xf32> to vector<2x16x1xf32>
    %72 = tpu.reciprocal %71 {approx = true} : vector<2x16x1xf32> -> vector<2x16x1xf32>
    %73 = vector.broadcast %72 : vector<2x16x1xf32> to vector<2x16x16xf32>
    %74 = arith.mulf %69, %73 : vector<2x16x16xf32>
    %75 = arith.truncf %74 : vector<2x16x16xf32> to vector<2x16x16xbf16>
    "tpu.trace_start"() <{level = 10 : i32, message = "bqk,bkd->bqd"}> : () -> ()
    %cst_22 = arith.constant dense<0.000000e+00> : vector<2x16x8xf32>
    %76 = tpu.matmul %75, %63, %cst_22 {dimension_numbers = #tpu.dot_dimension_numbers<[2], [1], [1], [2], [0, 0, 0, 1, 1, 2], [0], [0]>} : vector<2x16x16xbf16>, vector<2x16x8xbf16>, vector<2x16x8xf32> -> vector<2x16x8xf32>
    "tpu.trace_stop"() : () -> ()
    %77 = vector.shape_cast %76 : vector<2x16x8xf32> to vector<32x8xf32>
    %78 = arith.truncf %77 : vector<32x8xf32> to vector<32x8xbf16>
    %79 = vector.extract_strided_slice %17 {offsets = [16, 0], sizes = [8, 32], strides = [1, 1]} : vector<32x32xbf16> to vector<8x32xbf16>
    %cst_23 = arith.constant dense<0.000000e+00> : vector<32x32xf32>
    %80 = tpu.matmul %78, %79, %cst_23 {dimension_numbers = #tpu.dot_dimension_numbers<[1], [0], [0], [1], [0, 0, 1, 1], [], []>} : vector<32x8xbf16>, vector<8x32xbf16>, vector<32x32xf32> -> vector<32x32xf32>
    %81 = arith.addf %60, %80 : vector<32x32xf32>
    %82 = vector.extract_strided_slice %10 {offsets = [0, 0, 24], sizes = [2, 16, 8], strides = [1, 1, 1]} : vector<2x16x32xbf16> to vector<2x16x8xbf16>
    %83 = vector.extract_strided_slice %13 {offsets = [0, 0, 24], sizes = [2, 16, 8], strides = [1, 1, 1]} : vector<2x16x32xbf16> to vector<2x16x8xbf16>
    %84 = vector.extract_strided_slice %16 {offsets = [0, 0, 24], sizes = [2, 16, 8], strides = [1, 1, 1]} : vector<2x16x32xbf16> to vector<2x16x8xbf16>
    "tpu.trace_start"() <{level = 10 : i32, message = "bqd,bkd->bqk"}> : () -> ()
    %cst_24 = arith.constant dense<0.000000e+00> : vector<2x16x16xf32>
    %85 = tpu.matmul %82, %83, %cst_24 {dimension_numbers = #tpu.dot_dimension_numbers<[2], [2], [1], [1], [0, 0, 0, 1, 1, 1], [0], [0]>} : vector<2x16x8xbf16>, vector<2x16x8xbf16>, vector<2x16x16xf32> -> vector<2x16x16xf32>
    "tpu.trace_stop"() : () -> ()
    %cst_25 = arith.constant dense<0xFF800000> : vector<2x16xf32>
    %86 = vector.multi_reduction <maximumf>, %85, %cst_25 [2] : vector<2x16x16xf32> to vector<2x16xf32>
    %87 = vector.shape_cast %86 : vector<2x16xf32> to vector<2x16x1xf32>
    %88 = vector.broadcast %87 : vector<2x16x1xf32> to vector<2x16x16xf32>
    %89 = arith.subf %85, %88 : vector<2x16x16xf32>
    %90 = math.exp %89 : vector<2x16x16xf32>
    %cst_26 = arith.constant dense<0.000000e+00> : vector<2x16xf32>
    %91 = vector.multi_reduction <add>, %90, %cst_26 [2] : vector<2x16x16xf32> to vector<2x16xf32>
    %92 = vector.shape_cast %91 : vector<2x16xf32> to vector<2x16x1xf32>
    %93 = tpu.reciprocal %92 {approx = true} : vector<2x16x1xf32> -> vector<2x16x1xf32>
    %94 = vector.broadcast %93 : vector<2x16x1xf32> to vector<2x16x16xf32>
    %95 = arith.mulf %90, %94 : vector<2x16x16xf32>
    %96 = arith.truncf %95 : vector<2x16x16xf32> to vector<2x16x16xbf16>
    "tpu.trace_start"() <{level = 10 : i32, message = "bqk,bkd->bqd"}> : () -> ()
    %cst_27 = arith.constant dense<0.000000e+00> : vector<2x16x8xf32>
    %97 = tpu.matmul %96, %84, %cst_27 {dimension_numbers = #tpu.dot_dimension_numbers<[2], [1], [1], [2], [0, 0, 0, 1, 1, 2], [0], [0]>} : vector<2x16x16xbf16>, vector<2x16x8xbf16>, vector<2x16x8xf32> -> vector<2x16x8xf32>
    "tpu.trace_stop"() : () -> ()
    %98 = vector.shape_cast %97 : vector<2x16x8xf32> to vector<32x8xf32>
    %99 = arith.truncf %98 : vector<32x8xf32> to vector<32x8xbf16>
    %100 = vector.extract_strided_slice %17 {offsets = [24, 0], sizes = [8, 32], strides = [1, 1]} : vector<32x32xbf16> to vector<8x32xbf16>
    %cst_28 = arith.constant dense<0.000000e+00> : vector<32x32xf32>
    %101 = tpu.matmul %99, %100, %cst_28 {dimension_numbers = #tpu.dot_dimension_numbers<[1], [0], [0], [1], [0, 0, 1, 1], [], []>} : vector<32x8xbf16>, vector<8x32xbf16>, vector<32x32xf32> -> vector<32x32xf32>
    %102 = arith.addf %81, %101 : vector<32x32xf32>
    %c0_29 = arith.constant 0 : index
    %c0_30 = arith.constant 0 : index
    %103 = vector.load %arg4[%c0_29, %c0_30] : memref<1x32xf32, #tpu.memory_space<vmem>>, vector<1x32xf32>
    %104 = vector.broadcast %103 : vector<1x32xf32> to vector<32x32xf32>
    %105 = arith.addf %102, %104 : vector<32x32xf32>
    %c0_31 = arith.constant 0 : index
    %c0_32 = arith.constant 0 : index
    %106 = vector.load %arg5[%c0_31, %c0_32] : memref<32x32xf32, #tpu.memory_space<vmem>>, vector<32x32xf32>
    tpu.vector_store %arg5[%c0_31, %c0_32], %105 {strides = array<i32>} : memref<32x32xf32, #tpu.memory_space<vmem>>, vector<32x32xf32>,
    return
  }
}

</mosaic_0001>

<llo_original>
// kernel: tpu_custom_call.1
$region0: #{tpu_custom_call.1}
  #allocation0 [shape = 'u32[]', space=smem, size = 0x4, offset = 0x4, fixed_abs, tag = 'smem constant byte address 0x4 - core index']
  #allocation1 [shape = 'u32[144,128]{1,0:T(1,128)}', space=vmem, size = 0x12000, scoped, tag = 'internal scratch']
  %s0 = inlined_call_operand.hbm [shape: bf16[32,32], index: 0, kind: input, shape index: {}]
  %s1 = inlined_call_operand.hbm [shape: bf16[32,96], index: 1, kind: input, shape index: {}]
  %s2 = inlined_call_operand.hbm [shape: bf16[32,32], index: 2, kind: input, shape index: {}]
  %s3 = inlined_call_operand.vmem [shape: f32[1,96], index: 3, kind: input, shape index: {}]
  %s4 = inlined_call_operand.vmem [shape: f32[1,32], index: 4, kind: input, shape index: {}]
  %s5 = inlined_call_operand.hbm [shape: f32[32,32], index: 5, kind: output, shape index: {}]
  %s6 = sld [smem:[#allocation0]]
  $region42: #{tpu_custom_call.1} parent=0
    _
  %s8 = ssub.s32 1, %s6
  %s9 = scalar_select 0, %s8, %s6
  $region1: #{tpu_custom_call.1} parent=0
    #allocation2 [shape = 'u8[8192]{0}', space=vmem, size = 0x2000, scoped, tag = 'input window, operand 0, single buffered']
    #allocation3 [shape = 's32[1]{0}', space=sflag, size = 0x4, scoped, tag = 'scoped memory for tpu_custom_call.1']
    #allocation4 [shape = 's32[1]{0}', space=sflag, size = 0x4, scoped, tag = 'scoped memory for tpu_custom_call.1']
    #allocation5 [shape = 'u8[8192]{0}', space=vmem, size = 0x2000, scoped, tag = 'input window, operand 1, single buffered']
    #allocation6 [shape = 's32[1]{0}', space=sflag, size = 0x4, scoped, tag = 'scoped memory for tpu_custom_call.1']
    #allocation7 [shape = 'u8[8192]{0}', space=vmem, size = 0x2000, scoped, tag = 'input window, operand 2, single buffered']
    #allocation8 [shape = 'u8[16384]{0}', space=vmem, size = 0x4000, scoped, tag = 'output window, operand 0, single buffered']
    %10 = vsyncpa [#allocation3], 0
    %11 = vsyncpa [#allocation6], 0
    %12 = vsyncpa [#allocation4], 0
    // Predicated region
    $region2: #{tpu_custom_call.1} parent=1 // pred_check
      _
    $region3: #{tpu_custom_call.1} parent=1 // pred_check_branch
      %14 = sbr.rel (0) target = $region5
    $region4: #{tpu_custom_call.1} parent=1 // pred_region
      %s16 = ssub.s32 256, 256
      %17 = vsyncadd [#allocation3], %s16
      %s18 = sshll.u32 [#allocation2], 4
      %s19 = int_to_ptr.vmem [resolvable:$true] %s18
      %24 = dma.hbm_to_vmem [thread:$0]  %s0, 256, %s19, [#allocation3], 64, 64, 4
    $region5: #{tpu_custom_call.1} parent=1 // pred_fallthru
      _
    // Predicated region
    $region6: #{tpu_custom_call.1} parent=1 // pred_check
      _
    $region7: #{tpu_custom_call.1} parent=1 // pred_check_branch
      %26 = sbr.rel (0) target = $region9
    $region8: #{tpu_custom_call.1} parent=1 // pred_region
      %s28 = ssub.s32 256, 256
      %29 = vsyncadd [#allocation6], %s28
      %s30 = sshll.u32 [#allocation5], 4
      %s31 = int_to_ptr.vmem [resolvable:$true] %s30
      %36 = dma.hbm_to_vmem [thread:$0]  %s1, 256, %s31, [#allocation6], 64, 64, 4
    $region9: #{tpu_custom_call.1} parent=1 // pred_fallthru
      _
    // Predicated region
    $region10: #{tpu_custom_call.1} parent=1 // pred_check
      _
    $region11: #{tpu_custom_call.1} parent=1 // pred_check_branch
      %38 = sbr.rel (0) target = $region13
    $region12: #{tpu_custom_call.1} parent=1 // pred_region
      %s40 = ssub.s32 256, 256
      %41 = vsyncadd [#allocation6], %s40
      %s42 = sshll.u32 [#allocation7], 4
      %s43 = int_to_ptr.vmem [resolvable:$true] %s42
      %48 = dma.hbm_to_vmem [thread:$0]  %s2, 256, %s43, [#allocation6], 64, 64, 4
    $region13: #{tpu_custom_call.1} parent=1 // pred_fallthru
      _
    // Predicated region
    $region14: #{tpu_custom_call.1} parent=1 // pred_check
      _
    $region15: #{tpu_custom_call.1} parent=1 // pred_check_branch
      %50 = sbr.rel (0) target = $region17
    $region16: #{tpu_custom_call.1} parent=1 // pred_region
      _
    $region17: #{tpu_custom_call.1} parent=1 // pred_fallthru
      _
    // Predicated region
    $region18: #{tpu_custom_call.1} parent=1 // pred_check
      _
    $region19: #{tpu_custom_call.1} parent=1 // pred_check_branch
      %52 = sbr.rel (0) target = $region21
    $region20: #{tpu_custom_call.1} parent=1 // pred_region
      _
    $region21: #{tpu_custom_call.1} parent=1 // pred_fallthru
      _
    // Predicated region
    $region22: #{tpu_custom_call.1} parent=1 // pred_check
      _
    $region23: #{tpu_custom_call.1} parent=1 // pred_check_branch
      %54 = sbr.rel (0) target = $region25
    $region24: #{tpu_custom_call.1} parent=1 // pred_region
      %55 = dma.done [#allocation3], 256
    $region25: #{tpu_custom_call.1} parent=1 // pred_fallthru
      _
    // Predicated region
    $region26: #{tpu_custom_call.1} parent=1 // pred_check
      _
    $region27: #{tpu_custom_call.1} parent=1 // pred_check_branch
      %57 = sbr.rel (0) target = $region29
    $region28: #{tpu_custom_call.1} parent=1 // pred_region
      %58 = dma.done [#allocation6], 256
    $region29: #{tpu_custom_call.1} parent=1 // pred_fallthru
      _
    // Predicated region
    $region30: #{tpu_custom_call.1} parent=1 // pred_check
      _
    $region31: #{tpu_custom_call.1} parent=1 // pred_check_branch
      %60 = sbr.rel (0) target = $region33
    $region32: #{tpu_custom_call.1} parent=1 // pred_region
      %61 = dma.done [#allocation6], 256
    $region33: #{tpu_custom_call.1} parent=1 // pred_fallthru
      _
    %v63 = vld [vmem:[#allocation2] sm:$0xf]
    %v64 = vld [vmem:[#allocation2 + $0x4] sm:$0xf]
    %v65 = vld [vmem:[#allocation2 + $0x8] sm:$0xf]
    %v66 = vld [vmem:[#allocation2 + $0xc] sm:$0xf]
    %v67 = vld [vmem:[#allocation5] sm:$0xf]
    %v68 = vld [vmem:[#allocation5 + $0x4] sm:$0xf]
    %v69 = vld [vmem:[#allocation5 + $0x8] sm:$0xf]
    %v70 = vld [vmem:[#allocation5 + $0xc] sm:$0xf]
    %v71 = vld [vmem:[%s3] sm:$0x1]
    %v73 = vlaneseq
    %v74 = vshrl.u32 %v73, 7
    %v75 = vsub.s32 0, %v74
    %v76 = vrot.slane %v71, %v75
    %v82 = vunpack.c.l.b16 %v63
    %v83 = vunpack.c.l.b16 %v64
    %v84 = vunpack.c.l.b16 %v65
    %v85 = vunpack.c.l.b16 %v66
    %v86 = vpack.c.b16 %v83, %v82
    %v87 = vpack.c.b16 %v85, %v84
    %v92 = vunpack.c.l.b16 %v67
    %v93 = vunpack.c.l.b16 %v68
    %v94 = vunpack.c.l.b16 %v69
    %v95 = vunpack.c.l.b16 %v70
    %v96 = vpack.c.b16 %v93, %v92
    %v97 = vpack.c.b16 %v95, %v94
    %vm100 = vcmask 261120
    %v102 = vsel %vm100, %v86, 0
    %v105 = vsel %vm100, %v87, 0
    %107 = vmatprep.subr.bf16.mxu0 0
    %108 = vmatpush1.bf16.msra.mxu0 %v96
    %109 = vmatprep.subr.bf16.mxu0 0
    %110 = vmatpush1.bf16.msra.mxu0 %v97
    %111 = vmatprep.subr.bf16.mxu0 0
    %112 = vmatpush1.bf16.msra.mxu0 0
    %113 = vmatprep.subr.bf16.mxu0 0
    %114 = vmatpush1.bf16.msra.mxu0 0
    %115 = vmatprep.subr.bf16.mxu0 0
    %116 = vmatpush1.bf16.msra.mxu0 0
    %117 = vmatprep.subr.bf16.mxu0 0
    %118 = vmatpush1.bf16.msra.mxu0 0
    %119 = vmatprep.subr.bf16.mxu0 0
    %120 = vmatpush1.bf16.msra.mxu0 0
    %121 = vmatprep.subr.bf16.mxu0 0
    %122 = vmatpush1.bf16.msra.mxu0 0
    %123 = vmatprep.subr.bf16.mxu0 0
    %124 = vmatpush1.bf16.msra.mxu0 0
    %125 = vmatprep.subr.bf16.mxu0 0
    %126 = vmatpush1.bf16.msra.mxu0 0
    %127 = vmatprep.subr.bf16.mxu0 0
    %128 = vmatpush1.bf16.msra.mxu0 0
    %129 = vmatprep.subr.bf16.mxu0 0
    %130 = vmatpush1.bf16.msra.mxu0 0
    %131 = vmatprep.subr.bf16.mxu0 0
    %132 = vmatpush1.bf16.msra.mxu0 0
    %133 = vmatprep.subr.bf16.mxu0 0
    %134 = vmatpush1.bf16.msra.mxu0 0
    %135 = vmatprep.subr.bf16.mxu0 0
    %136 = vmatpush1.bf16.msra.mxu0 0
    %137 = vmatprep.subr.bf16.mxu0 0
    %138 = vmatpush1.bf16.msra.mxu0 0
    %139 = vmatprep.mubr.bf16.mxu0 0
    %140 = vmatmul.mubr.bf16.gmra.mrb[0].mxu0 %v102
    %v141 = vpop.f32.mrb[0].mxu0
    %v142 = vadd.f32 %v76, %v141
    %v143 = vpop.f32.mrb[0].mxu0
    %v144 = vpop.f32.mrb[0].mxu0
    %v145 = vadd.f32 %v76, %v144
    %v146 = vpop.f32.mrb[0].mxu0
    %147 = vmatprep.mubr.bf16.mxu0 0
    %148 = vmatmul.mubr.bf16.gmra.mrb[0].mxu0 %v105
    %v149 = vpop.f32.mrb[0].mxu0
    %v150 = vadd.f32 %v76, %v149
    %v151 = vpop.f32.mrb[0].mxu0
    %v152 = vpop.f32.mrb[0].mxu0
    %v153 = vadd.f32 %v76, %v152
    %v154 = vpop.f32.mrb[0].mxu0
    %155 = vdwg.mxu0
    %v156 = vmul.f32 %v142, 0.35355338
    %v157 = vmul.f32 %v145, 0.35355338
    %v158 = vmul.f32 %v150, 0.35355338
    %v159 = vmul.f32 %v153, 0.35355338
    %v160 = vpack.c.bf16 %v157, %v156
    %v161 = vpack.c.bf16 %v159, %v158
    %v162 = vpack.c.bf16 %v145, %v142
    %v163 = vpack.c.bf16 %v153, %v150
    %v164 = vld [vmem:[#allocation7] sm:$0xf]
    %v165 = vld [vmem:[#allocation7 + $0x4] sm:$0xf]
    %v166 = vld [vmem:[#allocation7 + $0x8] sm:$0xf]
    %v167 = vld [vmem:[#allocation7 + $0xc] sm:$0xf]
    %169 = vrot.lane.b32.xlu0 %v162, 96
    %v170 = vpop.permute.xlu0 %169
    %vm171 = vcmask 64512
    %v173 = vsel %vm171, %v160, 0
    %v176 = vsel %vm171, %v170, 0
    %178 = vmatprep.subr.bf16.mxu0 0
    %179 = vmatpush1.bf16.xpose.msra.mxu0 %v176
    %180 = vmatprep.subr.bf16.mxu0 0
    %181 = vmatpush1.bf16.xpose.msra.mxu0 0
    %182 = vmatprep.subr.bf16.mxu0 0
    %183 = vmatpush1.bf16.xpose.msra.mxu0 0
    %184 = vmatprep.subr.bf16.mxu0 0
    %185 = vmatpush1.bf16.xpose.msra.mxu0 0
    %186 = vmatprep.subr.bf16.mxu0 0
    %187 = vmatpush1.bf16.xpose.msra.mxu0 0
    %188 = vmatprep.subr.bf16.mxu0 0
    %189 = vmatpush1.bf16.xpose.msra.mxu0 0
    %190 = vmatprep.subr.bf16.mxu0 0
    %191 = vmatpush1.bf16.xpose.msra.mxu0 0
    %192 = vmatprep.subr.bf16.mxu0 0
    %193 = vmatpush1.bf16.xpose.msra.mxu0 0
    %194 = vmatprep.subr.bf16.mxu0 0
    %195 = vmatpush1.bf16.xpose.msra.mxu0 0
    %196 = vmatprep.subr.bf16.mxu0 0
    %197 = vmatpush1.bf16.xpose.msra.mxu0 0
    %198 = vmatprep.subr.bf16.mxu0 0
    %199 = vmatpush1.bf16.xpose.msra.mxu0 0
    %200 = vmatprep.subr.bf16.mxu0 0
    %201 = vmatpush1.bf16.xpose.msra.mxu0 0
    %202 = vmatprep.subr.bf16.mxu0 0
    %203 = vmatpush1.bf16.xpose.msra.mxu0 0
    %204 = vmatprep.subr.bf16.mxu0 0
    %205 = vmatpush1.bf16.xpose.msra.mxu0 0
    %206 = vmatprep.subr.bf16.mxu0 0
    %207 = vmatpush1.bf16.xpose.msra.mxu0 0
    %208 = vmatprep.subr.bf16.mxu0 0
    %209 = vmatpush1.bf16.xpose.msra.mxu0 0
    %210 = vmatprep.mubr.bf16.mxu0 0
    %211 = vmatmul.mubr.bf16.gmra.mrb[0].mxu0 %v173
    %v212 = vpop.f32.mrb[0].mxu0
    %v213 = vadd.f32 0.0, %v212
    %v214 = vpop.f32.mrb[0].mxu0
    %v215 = vpop.f32.mrb[0].mxu0
    %v216 = vadd.f32 0.0, %v215
    %v217 = vpop.f32.mrb[0].mxu0
    %218 = vdwg.mxu0
    %220 = vrot.lane.b32.xlu0 %v163, 96
    %v221 = vpop.permute.xlu0 %220
    %v223 = vsel %vm171, %v161, 0
    %v226 = vsel %vm171, %v221, 0
    %228 = vmatprep.subr.bf16.mxu0 0
    %229 = vmatpush1.bf16.xpose.msra.mxu0 %v226
    %230 = vmatprep.subr.bf16.mxu0 0
    %231 = vmatpush1.bf16.xpose.msra.mxu0 0
    %232 = vmatprep.subr.bf16.mxu0 0
    %233 = vmatpush1.bf16.xpose.msra.mxu0 0
    %234 = vmatprep.subr.bf16.mxu0 0
    %235 = vmatpush1.bf16.xpose.msra.mxu0 0
    %236 = vmatprep.subr.bf16.mxu0 0
    %237 = vmatpush1.bf16.xpose.msra.mxu0 0
    %238 = vmatprep.subr.bf16.mxu0 0
    %239 = vmatpush1.bf16.xpose.msra.mxu0 0
    %240 = vmatprep.subr.bf16.mxu0 0
    %241 = vmatpush1.bf16.xpose.msra.mxu0 0
    %242 = vmatprep.subr.bf16.mxu0 0
    %243 = vmatpush1.bf16.xpose.msra.mxu0 0
    %244 = vmatprep.subr.bf16.mxu0 0
    %245 = vmatpush1.bf16.xpose.msra.mxu0 0
    %246 = vmatprep.subr.bf16.mxu0 0
    %247 = vmatpush1.bf16.xpose.msra.mxu0 0
    %248 = vmatprep.subr.bf16.mxu0 0
    %249 = vmatpush1.bf16.xpose.msra.mxu0 0
    %250 = vmatprep.subr.bf16.mxu0 0
    %251 = vmatpush1.bf16.xpose.msra.mxu0 0
    %252 = vmatprep.subr.bf16.mxu0 0
    %253 = vmatpush1.bf16.xpose.msra.mxu0 0
    %254 = vmatprep.subr.bf16.mxu0 0
    %255 = vmatpush1.bf16.xpose.msra.mxu0 0
    %256 = vmatprep.subr.bf16.mxu0 0
    %257 = vmatpush1.bf16.xpose.msra.mxu0 0
    %258 = vmatprep.subr.bf16.mxu0 0
    %259 = vmatpush1.bf16.xpose.msra.mxu0 0
    %260 = vmatprep.mubr.bf16.mxu0 0
    %261 = vmatmul.mubr.bf16.gmra.mrb[0].mxu0 %v223
    %v262 = vpop.f32.mrb[0].mxu0
    %v263 = vadd.f32 0.0, %v262
    %v264 = vpop.f32.mrb[0].mxu0
    %v265 = vpop.f32.mrb[0].mxu0
    %v266 = vadd.f32 0.0, %v265
    %v267 = vpop.f32.mrb[0].mxu0
    %268 = vdwg.mxu0
    %vm269 = vcmask 130048
    %v270 = vsel %vm269, %v213, -inf
    %271 = vmax.xlane.f32.xlu0 %v270
    %v272 = vpop.xlane.xlu0 %271
    %v273 = vsel %vm269, %v216, -inf
    %274 = vmax.xlane.f32.xlu0 %v273
    %v275 = vpop.xlane.xlu0 %274
    %v276 = vsel %vm269, %v263, -inf
    %277 = vmax.xlane.f32.xlu0 %v276
    %v278 = vpop.xlane.xlu0 %277
    %v279 = vsel %vm269, %v266, -inf
    %280 = vmax.xlane.f32.xlu0 %v279
    %v281 = vpop.xlane.xlu0 %280
    %v282 = vsub.f32 %v213, %v272
    %v283 = vsub.f32 %v216, %v275
    %v284 = vsub.f32 %v263, %v278
    %v285 = vsub.f32 %v266, %v281
    %v286 = vmul.f32 %v282, 1.442695
    %v287 = vpow.pop %v286
    %v288 = vmul.f32 %v283, 1.442695
    %v289 = vpow.pop %v288
    %v290 = vmul.f32 %v284, 1.442695
    %v291 = vpow.pop %v290
    %v292 = vmul.f32 %v285, 1.442695
    %v293 = vpow.pop %v292
    %v294 = vsel %vm269, %v287, 0.0
    %295 = vadd.xlane.f32.xlu0 %v294
    %v296 = vpop.xlane.xlu0 %295
    %v297 = vsel %vm269, %v289, 0.0
    %298 = vadd.xlane.f32.xlu0 %v297
    %v299 = vpop.xlane.xlu0 %298
    %v300 = vsel %vm269, %v291, 0.0
    %301 = vadd.xlane.f32.xlu0 %v300
    %v302 = vpop.xlane.xlu0 %301
    %v303 = vsel %vm269, %v293, 0.0
    %304 = vadd.xlane.f32.xlu0 %v303
    %v305 = vpop.xlane.xlu0 %304
    %v306 = vrcp.pop %v296
    %v307 = vrcp.pop %v299
    %v308 = vrcp.pop %v302
    %v309 = vrcp.pop %v305
    %v310 = vmul.f32 %v287, %v306
    %v311 = vmul.f32 %v289, %v307
    %v312 = vmul.f32 %v291, %v308
    %v313 = vmul.f32 %v293, %v309
    %v314 = vpack.c.bf16 %v311, %v310
    %v315 = vpack.c.bf16 %v313, %v312
    %316 = vrot.lane.b32.xlu0 %v162, 64
    %v317 = vpop.permute.xlu0 %316
    %v320 = vsel %vm269, %v314, 0
    %322 = vmatprep.subr.bf16.mxu0 0
    %323 = vmatpush1.bf16.msra.mxu0 %v317
    %324 = vmatprep.subr.bf16.mxu0 0
    %325 = vmatpush1.bf16.msra.mxu0 0
    %326 = vmatprep.subr.bf16.mxu0 0
    %327 = vmatpush1.bf16.msra.mxu0 0
    %328 = vmatprep.subr.bf16.mxu0 0
    %329 = vmatpush1.bf16.msra.mxu0 0
    %330 = vmatprep.subr.bf16.mxu0 0
    %331 = vmatpush1.bf16.msra.mxu0 0
    %332 = vmatprep.subr.bf16.mxu0 0
    %333 = vmatpush1.bf16.msra.mxu0 0
    %334 = vmatprep.subr.bf16.mxu0 0
    %335 = vmatpush1.bf16.msra.mxu0 0
    %336 = vmatprep.subr.bf16.mxu0 0
    %337 = vmatpush1.bf16.msra.mxu0 0
    %338 = vmatprep.subr.bf16.mxu0 0
    %339 = vmatpush1.bf16.msra.mxu0 0
    %340 = vmatprep.subr.bf16.mxu0 0
    %341 = vmatpush1.bf16.msra.mxu0 0
    %342 = vmatprep.subr.bf16.mxu0 0
    %343 = vmatpush1.bf16.msra.mxu0 0
    %344 = vmatprep.subr.bf16.mxu0 0
    %345 = vmatpush1.bf16.msra.mxu0 0
    %346 = vmatprep.subr.bf16.mxu0 0
    %347 = vmatpush1.bf16.msra.mxu0 0
    %348 = vmatprep.subr.bf16.mxu0 0
    %349 = vmatpush1.bf16.msra.mxu0 0
    %350 = vmatprep.subr.bf16.mxu0 0
    %351 = vmatpush1.bf16.msra.mxu0 0
    %352 = vmatprep.subr.bf16.mxu0 0
    %353 = vmatpush1.bf16.msra.mxu0 0
    %354 = vmatprep.mubr.bf16.mxu0 0
    %355 = vmatmul.mubr.bf16.gmra.mrb[0].mxu0 %v320
    %v356 = vpop.f32.mrb[0].mxu0
    %v357 = vadd.f32 0.0, %v356
    %v358 = vpop.f32.mrb[0].mxu0
    %v359 = vpop.f32.mrb[0].mxu0
    %v360 = vadd.f32 0.0, %v359
    %v361 = vpop.f32.mrb[0].mxu0
    %362 = vdwg.mxu0
    %363 = vrot.lane.b32.xlu0 %v163, 64
    %v364 = vpop.permute.xlu0 %363
    %v367 = vsel %vm269, %v315, 0
    %369 = vmatprep.subr.bf16.mxu0 0
    %370 = vmatpush1.bf16.msra.mxu0 %v364
    %371 = vmatprep.subr.bf16.mxu0 0
    %372 = vmatpush1.bf16.msra.mxu0 0
    %373 = vmatprep.subr.bf16.mxu0 0
    %374 = vmatpush1.bf16.msra.mxu0 0
    %375 = vmatprep.subr.bf16.mxu0 0
    %376 = vmatpush1.bf16.msra.mxu0 0
    %377 = vmatprep.subr.bf16.mxu0 0
    %378 = vmatpush1.bf16.msra.mxu0 0
    %379 = vmatprep.subr.bf16.mxu0 0
    %380 = vmatpush1.bf16.msra.mxu0 0
    %381 = vmatprep.subr.bf16.mxu0 0
    %382 = vmatpush1.bf16.msra.mxu0 0
    %383 = vmatprep.subr.bf16.mxu0 0
    %384 = vmatpush1.bf16.msra.mxu0 0
    %385 = vmatprep.subr.bf16.mxu0 0
    %386 = vmatpush1.bf16.msra.mxu0 0
    %387 = vmatprep.subr.bf16.mxu0 0
    %388 = vmatpush1.bf16.msra.mxu0 0
    %389 = vmatprep.subr.bf16.mxu0 0
    %390 = vmatpush1.bf16.msra.mxu0 0
    %391 = vmatprep.subr.bf16.mxu0 0
    %392 = vmatpush1.bf16.msra.mxu0 0
    %393 = vmatprep.subr.bf16.mxu0 0
    %394 = vmatpush1.bf16.msra.mxu0 0
    %395 = vmatprep.subr.bf16.mxu0 0
    %396 = vmatpush1.bf16.msra.mxu0 0
    %397 = vmatprep.subr.bf16.mxu0 0
    %398 = vmatpush1.bf16.msra.mxu0 0
    %399 = vmatprep.subr.bf16.mxu0 0
    %400 = vmatpush1.bf16.msra.mxu0 0
    %401 = vmatprep.mubr.bf16.mxu0 0
    %402 = vmatmul.mubr.bf16.gmra.mrb[0].mxu0 %v367
    %v403 = vpop.f32.mrb[0].mxu0
    %v404 = vadd.f32 0.0, %v403
    %v405 = vpop.f32.mrb[0].mxu0
    %v406 = vpop.f32.mrb[0].mxu0
    %v407 = vadd.f32 0.0, %v406
    %v408 = vpop.f32.mrb[0].mxu0
    %409 = vdwg.mxu0
    %v410 = vpack.c.bf16 %v360, %v357
    %v411 = vpack.c.bf16 %v407, %v404
    %413 = vrot.lane.b32.xlu0 %v160, 120
    %v414 = vpop.permute.xlu0 %413
    %415 = vrot.lane.b32.xlu0 %v162, 88
    %v416 = vpop.permute.xlu0 %415
    %v418 = vsel %vm171, %v414, 0
    %v421 = vsel %vm171, %v416, 0
    %423 = vmatprep.subr.bf16.mxu0 0
    %424 = vmatpush1.bf16.xpose.msra.mxu0 %v421
    %425 = vmatprep.subr.bf16.mxu0 0
    %426 = vmatpush1.bf16.xpose.msra.mxu0 0
    %427 = vmatprep.subr.bf16.mxu0 0
    %428 = vmatpush1.bf16.xpose.msra.mxu0 0
    %429 = vmatprep.subr.bf16.mxu0 0
    %430 = vmatpush1.bf16.xpose.msra.mxu0 0
    %431 = vmatprep.subr.bf16.mxu0 0
    %432 = vmatpush1.bf16.xpose.msra.mxu0 0
    %433 = vmatprep.subr.bf16.mxu0 0
    %434 = vmatpush1.bf16.xpose.msra.mxu0 0
    %435 = vmatprep.subr.bf16.mxu0 0
    %436 = vmatpush1.bf16.xpose.msra.mxu0 0
    %437 = vmatprep.subr.bf16.mxu0 0
    %438 = vmatpush1.bf16.xpose.msra.mxu0 0
    %439 = vmatprep.subr.bf16.mxu0 0
    %440 = vmatpush1.bf16.xpose.msra.mxu0 0
    %441 = vmatprep.subr.bf16.mxu0 0
    %442 = vmatpush1.bf16.xpose.msra.mxu0 0
    %443 = vmatprep.subr.bf16.mxu0 0
    %444 = vmatpush1.bf16.xpose.msra.mxu0 0
    %445 = vmatprep.subr.bf16.mxu0 0
    %446 = vmatpush1.bf16.xpose.msra.mxu0 0
    %447 = vmatprep.subr.bf16.mxu0 0
    %448 = vmatpush1.bf16.xpose.msra.mxu0 0
    %449 = vmatprep.subr.bf16.mxu0 0
    %450 = vmatpush1.bf16.xpose.msra.mxu0 0
    %451 = vmatprep.subr.bf16.mxu0 0
    %452 = vmatpush1.bf16.xpose.msra.mxu0 0
    %453 = vmatprep.subr.bf16.mxu0 0
    %454 = vmatpush1.bf16.xpose.msra.mxu0 0
    %455 = vmatprep.mubr.bf16.mxu0 0
    %456 = vmatmul.mubr.bf16.gmra.mrb[0].mxu0 %v418
    %v457 = vpop.f32.mrb[0].mxu0
    %v458 = vadd.f32 0.0, %v457
    %v459 = vpop.f32.mrb[0].mxu0
    %v460 = vpop.f32.mrb[0].mxu0
    %v461 = vadd.f32 0.0, %v460
    %v462 = vpop.f32.mrb[0].mxu0
    %463 = vdwg.mxu0
    %465 = vrot.lane.b32.xlu0 %v161, 120
    %v466 = vpop.permute.xlu0 %465
    %467 = vrot.lane.b32.xlu0 %v163, 88
    %v468 = vpop.permute.xlu0 %467
    %v470 = vsel %vm171, %v466, 0
    %v473 = vsel %vm171, %v468, 0
    %475 = vmatprep.subr.bf16.mxu0 0
    %476 = vmatpush1.bf16.xpose.msra.mxu0 %v473
    %477 = vmatprep.subr.bf16.mxu0 0
    %478 = vmatpush1.bf16.xpose.msra.mxu0 0
    %479 = vmatprep.subr.bf16.mxu0 0
    %480 = vmatpush1.bf16.xpose.msra.mxu0 0
    %481 = vmatprep.subr.bf16.mxu0 0
    %482 = vmatpush1.bf16.xpose.msra.mxu0 0
    %483 = vmatprep.subr.bf16.mxu0 0
    %484 = vmatpush1.bf16.xpose.msra.mxu0 0
    %485 = vmatprep.subr.bf16.mxu0 0
    %486 = vmatpush1.bf16.xpose.msra.mxu0 0
    %487 = vmatprep.subr.bf16.mxu0 0
    %488 = vmatpush1.bf16.xpose.msra.mxu0 0
    %489 = vmatprep.subr.bf16.mxu0 0
    %490 = vmatpush1.bf16.xpose.msra.mxu0 0
    %491 = vmatprep.subr.bf16.mxu0 0
    %492 = vmatpush1.bf16.xpose.msra.mxu0 0
    %493 = vmatprep.subr.bf16.mxu0 0
    %494 = vmatpush1.bf16.xpose.msra.mxu0 0
    %495 = vmatprep.subr.bf16.mxu0 0
    %496 = vmatpush1.bf16.xpose.msra.mxu0 0
    %497 = vmatprep.subr.bf16.mxu0 0
    %498 = vmatpush1.bf16.xpose.msra.mxu0 0
    %499 = vmatprep.subr.bf16.mxu0 0
    %500 = vmatpush1.bf16.xpose.msra.mxu0 0
    %501 = vmatprep.subr.bf16.mxu0 0
    %502 = vmatpush1.bf16.xpose.msra.mxu0 0
    %503 = vmatprep.subr.bf16.mxu0 0
    %504 = vmatpush1.bf16.xpose.msra.mxu0 0
    %505 = vmatprep.subr.bf16.mxu0 0
    %506 = vmatpush1.bf16.xpose.msra.mxu0 0
    %507 = vmatprep.mubr.bf16.mxu0 0
    %508 = vmatmul.mubr.bf16.gmra.mrb[0].mxu0 %v470
    %v509 = vpop.f32.mrb[0].mxu0
    %v510 = vadd.f32 0.0, %v509
    %v511 = vpop.f32.mrb[0].mxu0
    %v512 = vpop.f32.mrb[0].mxu0
    %v513 = vadd.f32 0.0, %v512
    %v514 = vpop.f32.mrb[0].mxu0
    %515 = vdwg.mxu0
    %v516 = vsel %vm269, %v458, -inf
    %517 = vmax.xlane.f32.xlu0 %v516
    %v518 = vpop.xlane.xlu0 %517
    %v519 = vsel %vm269, %v461, -inf
    %520 = vmax.xlane.f32.xlu0 %v519
    %v521 = vpop.xlane.xlu0 %520
    %v522 = vsel %vm269, %v510, -inf
    %523 = vmax.xlane.f32.xlu0 %v522
    %v524 = vpop.xlane.xlu0 %523
    %v525 = vsel %vm269, %v513, -inf
    %526 = vmax.xlane.f32.xlu0 %v525
    %v527 = vpop.xlane.xlu0 %526
    %v528 = vsub.f32 %v458, %v518
    %v529 = vsub.f32 %v461, %v521
    %v530 = vsub.f32 %v510, %v524
    %v531 = vsub.f32 %v513, %v527
    %v532 = vmul.f32 %v528, 1.442695
    %v533 = vpow.pop %v532
    %v534 = vmul.f32 %v529, 1.442695
    %v535 = vpow.pop %v534
    %v536 = vmul.f32 %v530, 1.442695
    %v537 = vpow.pop %v536
    %v538 = vmul.f32 %v531, 1.442695
    %v539 = vpow.pop %v538
    %v540 = vsel %vm269, %v533, 0.0
    %541 = vadd.xlane.f32.xlu0 %v540
    %v542 = vpop.xlane.xlu0 %541
    %v543 = vsel %vm269, %v535, 0.0
    %544 = vadd.xlane.f32.xlu0 %v543
    %v545 = vpop.xlane.xlu0 %544
    %v546 = vsel %vm269, %v537, 0.0
    %547 = vadd.xlane.f32.xlu0 %v546
    %v548 = vpop.xlane.xlu0 %547
    %v549 = vsel %vm269, %v539, 0.0
    %550 = vadd.xlane.f32.xlu0 %v549
    %v551 = vpop.xlane.xlu0 %550
    %v552 = vrcp.pop %v542
    %v553 = vrcp.pop %v545
    %v554 = vrcp.pop %v548
    %v555 = vrcp.pop %v551
    %v556 = vmul.f32 %v533, %v552
    %v557 = vmul.f32 %v535, %v553
    %v558 = vmul.f32 %v537, %v554
    %v559 = vmul.f32 %v539, %v555
    %v560 = vpack.c.bf16 %v557, %v556
    %v561 = vpack.c.bf16 %v559, %v558
    %562 = vrot.lane.b32.xlu0 %v162, 56
    %v563 = vpop.permute.xlu0 %562
    %v566 = vsel %vm269, %v560, 0
    %568 = vmatprep.subr.bf16.mxu0 0
    %569 = vmatpush1.bf16.msra.mxu0 %v563
    %570 = vmatprep.subr.bf16.mxu0 0
    %571 = vmatpush1.bf16.msra.mxu0 0
    %572 = vmatprep.subr.bf16.mxu0 0
    %573 = vmatpush1.bf16.msra.mxu0 0
    %574 = vmatprep.subr.bf16.mxu0 0
    %575 = vmatpush1.bf16.msra.mxu0 0
    %576 = vmatprep.subr.bf16.mxu0 0
    %577 = vmatpush1.bf16.msra.mxu0 0
    %578 = vmatprep.subr.bf16.mxu0 0
    %579 = vmatpush1.bf16.msra.mxu0 0
    %580 = vmatprep.subr.bf16.mxu0 0
    %581 = vmatpush1.bf16.msra.mxu0 0
    %582 = vmatprep.subr.bf16.mxu0 0
    %583 = vmatpush1.bf16.msra.mxu0 0
    %584 = vmatprep.subr.bf16.mxu0 0
    %585 = vmatpush1.bf16.msra.mxu0 0
    %586 = vmatprep.subr.bf16.mxu0 0
    %587 = vmatpush1.bf16.msra.mxu0 0
    %588 = vmatprep.subr.bf16.mxu0 0
    %589 = vmatpush1.bf16.msra.mxu0 0
    %590 = vmatprep.subr.bf16.mxu0 0
    %591 = vmatpush1.bf16.msra.mxu0 0
    %592 = vmatprep.subr.bf16.mxu0 0
    %593 = vmatpush1.bf16.msra.mxu0 0
    %594 = vmatprep.subr.bf16.mxu0 0
    %595 = vmatpush1.bf16.msra.mxu0 0
    %596 = vmatprep.subr.bf16.mxu0 0
    %597 = vmatpush1.bf16.msra.mxu0 0
    %598 = vmatprep.subr.bf16.mxu0 0
    %599 = vmatpush1.bf16.msra.mxu0 0
    %600 = vmatprep.mubr.bf16.mxu0 0
    %601 = vmatmul.mubr.bf16.gmra.mrb[0].mxu0 %v566
    %v602 = vpop.f32.mrb[0].mxu0
    %v603 = vadd.f32 0.0, %v602
    %v604 = vpop.f32.mrb[0].mxu0
    %v605 = vpop.f32.mrb[0].mxu0
    %v606 = vadd.f32 0.0, %v605
    %v607 = vpop.f32.mrb[0].mxu0
    %608 = vdwg.mxu0
    %609 = vrot.lane.b32.xlu0 %v163, 56
    %v610 = vpop.permute.xlu0 %609
    %v613 = vsel %vm269, %v561, 0
    %615 = vmatprep.subr.bf16.mxu0 0
    %616 = vmatpush1.bf16.msra.mxu0 %v610
    %617 = vmatprep.subr.bf16.mxu0 0
    %618 = vmatpush1.bf16.msra.mxu0 0
    %619 = vmatprep.subr.bf16.mxu0 0
    %620 = vmatpush1.bf16.msra.mxu0 0
    %621 = vmatprep.subr.bf16.mxu0 0
    %622 = vmatpush1.bf16.msra.mxu0 0
    %623 = vmatprep.subr.bf16.mxu0 0
    %624 = vmatpush1.bf16.msra.mxu0 0
    %625 = vmatprep.subr.bf16.mxu0 0
    %626 = vmatpush1.bf16.msra.mxu0 0
    %627 = vmatprep.subr.bf16.mxu0 0
    %628 = vmatpush1.bf16.msra.mxu0 0
    %629 = vmatprep.subr.bf16.mxu0 0
    %630 = vmatpush1.bf16.msra.mxu0 0
    %631 = vmatprep.subr.bf16.mxu0 0
    %632 = vmatpush1.bf16.msra.mxu0 0
    %633 = vmatprep.subr.bf16.mxu0 0
    %634 = vmatpush1.bf16.msra.mxu0 0
    %635 = vmatprep.subr.bf16.mxu0 0
    %636 = vmatpush1.bf16.msra.mxu0 0
    %637 = vmatprep.subr.bf16.mxu0 0
    %638 = vmatpush1.bf16.msra.mxu0 0
    %639 = vmatprep.subr.bf16.mxu0 0
    %640 = vmatpush1.bf16.msra.mxu0 0
    %641 = vmatprep.subr.bf16.mxu0 0
    %642 = vmatpush1.bf16.msra.mxu0 0
    %643 = vmatprep.subr.bf16.mxu0 0
    %644 = vmatpush1.bf16.msra.mxu0 0
    %645 = vmatprep.subr.bf16.mxu0 0
    %646 = vmatpush1.bf16.msra.mxu0 0
    %647 = vmatprep.mubr.bf16.mxu0 0
    %648 = vmatmul.mubr.bf16.gmra.mrb[0].mxu0 %v613
    %v649 = vpop.f32.mrb[0].mxu0
    %v650 = vadd.f32 0.0, %v649
    %v651 = vpop.f32.mrb[0].mxu0
    %v652 = vpop.f32.mrb[0].mxu0
    %v653 = vadd.f32 0.0, %v652
    %v654 = vpop.f32.mrb[0].mxu0
    %655 = vdwg.mxu0
    %v656 = vpack.c.bf16 %v606, %v603
    %v657 = vpack.c.bf16 %v653, %v650
    %v659 = vsel %vm171, %v656, 0
    %v662 = vsel %vm171, %v657, 0
    %vm664 = vcmask 1043456
    %v666 = vsel %vm664, %v165, 0
    %668 = vmatprep.subr.bf16.mxu0 0
    %669 = vmatpush1.bf16.msra.mxu0 %v666
    %670 = vmatprep.subr.bf16.mxu0 0
    %671 = vmatpush1.bf16.msra.mxu0 0
    %672 = vmatprep.subr.bf16.mxu0 0
    %673 = vmatpush1.bf16.msra.mxu0 0
    %674 = vmatprep.subr.bf16.mxu0 0
    %675 = vmatpush1.bf16.msra.mxu0 0
    %676 = vmatprep.subr.bf16.mxu0 0
    %677 = vmatpush1.bf16.msra.mxu0 0
    %678 = vmatprep.subr.bf16.mxu0 0
    %679 = vmatpush1.bf16.msra.mxu0 0
    %680 = vmatprep.subr.bf16.mxu0 0
    %681 = vmatpush1.bf16.msra.mxu0 0
    %682 = vmatprep.subr.bf16.mxu0 0
    %683 = vmatpush1.bf16.msra.mxu0 0
    %684 = vmatprep.subr.bf16.mxu0 0
    %685 = vmatpush1.bf16.msra.mxu0 0
    %686 = vmatprep.subr.bf16.mxu0 0
    %687 = vmatpush1.bf16.msra.mxu0 0
    %688 = vmatprep.subr.bf16.mxu0 0
    %689 = vmatpush1.bf16.msra.mxu0 0
    %690 = vmatprep.subr.bf16.mxu0 0
    %691 = vmatpush1.bf16.msra.mxu0 0
    %692 = vmatprep.subr.bf16.mxu0 0
    %693 = vmatpush1.bf16.msra.mxu0 0
    %694 = vmatprep.subr.bf16.mxu0 0
    %695 = vmatpush1.bf16.msra.mxu0 0
    %696 = vmatprep.subr.bf16.mxu0 0
    %697 = vmatpush1.bf16.msra.mxu0 0
    %698 = vmatprep.subr.bf16.mxu0 0
    %699 = vmatpush1.bf16.msra.mxu0 0
    %700 = vmatprep.mubr.bf16.mxu0 0
    %701 = vmatmul.mubr.bf16.gmra.mrb[0].mxu0 %v659
    %v702 = vpop.f32.mrb[0].mxu0
    %v703 = vadd.f32 0.0, %v702
    %v704 = vpop.f32.mrb[0].mxu0
    %v705 = vpop.f32.mrb[0].mxu0
    %v706 = vadd.f32 0.0, %v705
    %v707 = vpop.f32.mrb[0].mxu0
    %708 = vmatprep.mubr.bf16.mxu0 0
    %709 = vmatmul.mubr.bf16.gmra.mrb[0].mxu0 %v662
    %v710 = vpop.f32.mrb[0].mxu0
    %v711 = vadd.f32 0.0, %v710
    %v712 = vpop.f32.mrb[0].mxu0
    %v713 = vpop.f32.mrb[0].mxu0
    %v714 = vadd.f32 0.0, %v713
    %v715 = vpop.f32.mrb[0].mxu0
    %716 = vdwg.mxu0
    %v718 = vsel %vm171, %v410, 0
    %v721 = vsel %vm171, %v411, 0
    %v724 = vsel %vm664, %v164, 0
    %726 = vmatprep.subr.bf16.mxu0 0
    %727 = vmatpush1.bf16.msra.mxu0 %v724
    %728 = vmatprep.subr.bf16.mxu0 0
    %729 = vmatpush1.bf16.msra.mxu0 0
    %730 = vmatprep.subr.bf16.mxu0 0
    %731 = vmatpush1.bf16.msra.mxu0 0
    %732 = vmatprep.subr.bf16.mxu0 0
    %733 = vmatpush1.bf16.msra.mxu0 0
    %734 = vmatprep.subr.bf16.mxu0 0
    %735 = vmatpush1.bf16.msra.mxu0 0
    %736 = vmatprep.subr.bf16.mxu0 0
    %737 = vmatpush1.bf16.msra.mxu0 0
    %738 = vmatprep.subr.bf16.mxu0 0
    %739 = vmatpush1.bf16.msra.mxu0 0
    %740 = vmatprep.subr.bf16.mxu0 0
    %741 = vmatpush1.bf16.msra.mxu0 0
    %742 = vmatprep.subr.bf16.mxu0 0
    %743 = vmatpush1.bf16.msra.mxu0 0
    %744 = vmatprep.subr.bf16.mxu0 0
    %745 = vmatpush1.bf16.msra.mxu0 0
    %746 = vmatprep.subr.bf16.mxu0 0
    %747 = vmatpush1.bf16.msra.mxu0 0
    %748 = vmatprep.subr.bf16.mxu0 0
    %749 = vmatpush1.bf16.msra.mxu0 0
    %750 = vmatprep.subr.bf16.mxu0 0
    %751 = vmatpush1.bf16.msra.mxu0 0
    %752 = vmatprep.subr.bf16.mxu0 0
    %753 = vmatpush1.bf16.msra.mxu0 0
    %754 = vmatprep.subr.bf16.mxu0 0
    %755 = vmatpush1.bf16.msra.mxu0 0
    %756 = vmatprep.subr.bf16.mxu0 0
    %757 = vmatpush1.bf16.msra.mxu0 0
    %758 = vmatprep.mubr.bf16.mxu0 0
    %759 = vmatmul.mubr.bf16.gmra.mrb[0].mxu0 %v718
    %v760 = vpop.f32.mrb[0].mxu0
    %v761 = vadd.f32 %v703, %v760
    %v762 = vpop.f32.mrb[0].mxu0
    %v763 = vpop.f32.mrb[0].mxu0
    %v764 = vadd.f32 %v706, %v763
    %v765 = vpop.f32.mrb[0].mxu0
    %766 = vmatprep.mubr.bf16.mxu0 0
    %767 = vmatmul.mubr.bf16.gmra.mrb[0].mxu0 %v721
    %v768 = vpop.f32.mrb[0].mxu0
    %v769 = vadd.f32 %v711, %v768
    %v770 = vpop.f32.mrb[0].mxu0
    %v771 = vpop.f32.mrb[0].mxu0
    %v772 = vadd.f32 %v714, %v771
    %v773 = vpop.f32.mrb[0].mxu0
    %774 = vdwg.mxu0
    %775 = vrot.lane.b32.xlu0 %v160, 112
    %v776 = vpop.permute.xlu0 %775
    %777 = vrot.lane.b32.xlu0 %v162, 80
    %v778 = vpop.permute.xlu0 %777
    %v780 = vsel %vm171, %v776, 0
    %v783 = vsel %vm171, %v778, 0
    %785 = vmatprep.subr.bf16.mxu0 0
    %786 = vmatpush1.bf16.xpose.msra.mxu0 %v783
    %787 = vmatprep.subr.bf16.mxu0 0
    %788 = vmatpush1.bf16.xpose.msra.mxu0 0
    %789 = vmatprep.subr.bf16.mxu0 0
    %790 = vmatpush1.bf16.xpose.msra.mxu0 0
    %791 = vmatprep.subr.bf16.mxu0 0
    %792 = vmatpush1.bf16.xpose.msra.mxu0 0
    %793 = vmatprep.subr.bf16.mxu0 0
    %794 = vmatpush1.bf16.xpose.msra.mxu0 0
    %795 = vmatprep.subr.bf16.mxu0 0
    %796 = vmatpush1.bf16.xpose.msra.mxu0 0
    %797 = vmatprep.subr.bf16.mxu0 0
    %798 = vmatpush1.bf16.xpose.msra.mxu0 0
    %799 = vmatprep.subr.bf16.mxu0 0
    %800 = vmatpush1.bf16.xpose.msra.mxu0 0
    %801 = vmatprep.subr.bf16.mxu0 0
    %802 = vmatpush1.bf16.xpose.msra.mxu0 0
    %803 = vmatprep.subr.bf16.mxu0 0
    %804 = vmatpush1.bf16.xpose.msra.mxu0 0
    %805 = vmatprep.subr.bf16.mxu0 0
    %806 = vmatpush1.bf16.xpose.msra.mxu0 0
    %807 = vmatprep.subr.bf16.mxu0 0
    %808 = vmatpush1.bf16.xpose.msra.mxu0 0
    %809 = vmatprep.subr.bf16.mxu0 0
    %810 = vmatpush1.bf16.xpose.msra.mxu0 0
    %811 = vmatprep.subr.bf16.mxu0 0
    %812 = vmatpush1.bf16.xpose.msra.mxu0 0
    %813 = vmatprep.subr.bf16.mxu0 0
    %814 = vmatpush1.bf16.xpose.msra.mxu0 0
    %815 = vmatprep.subr.bf16.mxu0 0
    %816 = vmatpush1.bf16.xpose.msra.mxu0 0
    %817 = vmatprep.mubr.bf16.mxu0 0
    %818 = vmatmul.mubr.bf16.gmra.mrb[0].mxu0 %v780
    %v819 = vpop.f32.mrb[0].mxu0
    %v820 = vadd.f32 0.0, %v819
    %v821 = vpop.f32.mrb[0].mxu0
    %v822 = vpop.f32.mrb[0].mxu0
    %v823 = vadd.f32 0.0, %v822
    %v824 = vpop.f32.mrb[0].mxu0
    %825 = vdwg.mxu0
    %826 = vrot.lane.b32.xlu0 %v161, 112
    %v827 = vpop.permute.xlu0 %826
    %828 = vrot.lane.b32.xlu0 %v163, 80
    %v829 = vpop.permute.xlu0 %828
    %v831 = vsel %vm171, %v827, 0
    %v834 = vsel %vm171, %v829, 0
    %836 = vmatprep.subr.bf16.mxu0 0
    %837 = vmatpush1.bf16.xpose.msra.mxu0 %v834
    %838 = vmatprep.subr.bf16.mxu0 0
    %839 = vmatpush1.bf16.xpose.msra.mxu0 0
    %840 = vmatprep.subr.bf16.mxu0 0
    %841 = vmatpush1.bf16.xpose.msra.mxu0 0
    %842 = vmatprep.subr.bf16.mxu0 0
    %843 = vmatpush1.bf16.xpose.msra.mxu0 0
    %844 = vmatprep.subr.bf16.mxu0 0
    %845 = vmatpush1.bf16.xpose.msra.mxu0 0
    %846 = vmatprep.subr.bf16.mxu0 0
    %847 = vmatpush1.bf16.xpose.msra.mxu0 0
    %848 = vmatprep.subr.bf16.mxu0 0
    %849 = vmatpush1.bf16.xpose.msra.mxu0 0
    %850 = vmatprep.subr.bf16.mxu0 0
    %851 = vmatpush1.bf16.xpose.msra.mxu0 0
    %852 = vmatprep.subr.bf16.mxu0 0
    %853 = vmatpush1.bf16.xpose.msra.mxu0 0
    %854 = vmatprep.subr.bf16.mxu0 0
    %855 = vmatpush1.bf16.xpose.msra.mxu0 0
    %856 = vmatprep.subr.bf16.mxu0 0
    %857 = vmatpush1.bf16.xpose.msra.mxu0 0
    %858 = vmatprep.subr.bf16.mxu0 0
    %859 = vmatpush1.bf16.xpose.msra.mxu0 0
    %860 = vmatprep.subr.bf16.mxu0 0
    %861 = vmatpush1.bf16.xpose.msra.mxu0 0
    %862 = vmatprep.subr.bf16.mxu0 0
    %863 = vmatpush1.bf16.xpose.msra.mxu0 0
    %864 = vmatprep.subr.bf16.mxu0 0
    %865 = vmatpush1.bf16.xpose.msra.mxu0 0
    %866 = vmatprep.subr.bf16.mxu0 0
    %867 = vmatpush1.bf16.xpose.msra.mxu0 0
    %868 = vmatprep.mubr.bf16.mxu0 0
    %869 = vmatmul.mubr.bf16.gmra.mrb[0].mxu0 %v831
    %v870 = vpop.f32.mrb[0].mxu0
    %v871 = vadd.f32 0.0, %v870
    %v872 = vpop.f32.mrb[0].mxu0
    %v873 = vpop.f32.mrb[0].mxu0
    %v874 = vadd.f32 0.0, %v873
    %v875 = vpop.f32.mrb[0].mxu0
    %876 = vdwg.mxu0
    %v877 = vsel %vm269, %v820, -inf
    %878 = vmax.xlane.f32.xlu0 %v877
    %v879 = vpop.xlane.xlu0 %878
    %v880 = vsel %vm269, %v823, -inf
    %881 = vmax.xlane.f32.xlu0 %v880
    %v882 = vpop.xlane.xlu0 %881
    %v883 = vsel %vm269, %v871, -inf
    %884 = vmax.xlane.f32.xlu0 %v883
    %v885 = vpop.xlane.xlu0 %884
    %v886 = vsel %vm269, %v874, -inf
    %887 = vmax.xlane.f32.xlu0 %v886
    %v888 = vpop.xlane.xlu0 %887
    %v889 = vsub.f32 %v820, %v879
    %v890 = vsub.f32 %v823, %v882
    %v891 = vsub.f32 %v871, %v885
    %v892 = vsub.f32 %v874, %v888
    %v893 = vmul.f32 %v889, 1.442695
    %v894 = vpow.pop %v893
    %v895 = vmul.f32 %v890, 1.442695
    %v896 = vpow.pop %v895
    %v897 = vmul.f32 %v891, 1.442695
    %v898 = vpow.pop %v897
    %v899 = vmul.f32 %v892, 1.442695
    %v900 = vpow.pop %v899
    %v901 = vsel %vm269, %v894, 0.0
    %902 = vadd.xlane.f32.xlu0 %v901
    %v903 = vpop.xlane.xlu0 %902
    %v904 = vsel %vm269, %v896, 0.0
    %905 = vadd.xlane.f32.xlu0 %v904
    %v906 = vpop.xlane.xlu0 %905
    %v907 = vsel %vm269, %v898, 0.0
    %908 = vadd.xlane.f32.xlu0 %v907
    %v909 = vpop.xlane.xlu0 %908
    %v910 = vsel %vm269, %v900, 0.0
    %911 = vadd.xlane.f32.xlu0 %v910
    %v912 = vpop.xlane.xlu0 %911
    %v913 = vrcp.pop %v903
    %v914 = vrcp.pop %v906
    %v915 = vrcp.pop %v909
    %v916 = vrcp.pop %v912
    %v917 = vmul.f32 %v894, %v913
    %v918 = vmul.f32 %v896, %v914
    %v919 = vmul.f32 %v898, %v915
    %v920 = vmul.f32 %v900, %v916
    %v921 = vpack.c.bf16 %v918, %v917
    %v922 = vpack.c.bf16 %v920, %v919
    %923 = vrot.lane.b32.xlu0 %v162, 48
    %v924 = vpop.permute.xlu0 %923
    %v927 = vsel %vm269, %v921, 0
    %929 = vmatprep.subr.bf16.mxu0 0
    %930 = vmatpush1.bf16.msra.mxu0 %v924
    %931 = vmatprep.subr.bf16.mxu0 0
    %932 = vmatpush1.bf16.msra.mxu0 0
    %933 = vmatprep.subr.bf16.mxu0 0
    %934 = vmatpush1.bf16.msra.mxu0 0
    %935 = vmatprep.subr.bf16.mxu0 0
    %936 = vmatpush1.bf16.msra.mxu0 0
    %937 = vmatprep.subr.bf16.mxu0 0
    %938 = vmatpush1.bf16.msra.mxu0 0
    %939 = vmatprep.subr.bf16.mxu0 0
    %940 = vmatpush1.bf16.msra.mxu0 0
    %941 = vmatprep.subr.bf16.mxu0 0
    %942 = vmatpush1.bf16.msra.mxu0 0
    %943 = vmatprep.subr.bf16.mxu0 0
    %944 = vmatpush1.bf16.msra.mxu0 0
    %945 = vmatprep.subr.bf16.mxu0 0
    %946 = vmatpush1.bf16.msra.mxu0 0
    %947 = vmatprep.subr.bf16.mxu0 0
    %948 = vmatpush1.bf16.msra.mxu0 0
    %949 = vmatprep.subr.bf16.mxu0 0
    %950 = vmatpush1.bf16.msra.mxu0 0
    %951 = vmatprep.subr.bf16.mxu0 0
    %952 = vmatpush1.bf16.msra.mxu0 0
    %953 = vmatprep.subr.bf16.mxu0 0
    %954 = vmatpush1.bf16.msra.mxu0 0
    %955 = vmatprep.subr.bf16.mxu0 0
    %956 = vmatpush1.bf16.msra.mxu0 0
    %957 = vmatprep.subr.bf16.mxu0 0
    %958 = vmatpush1.bf16.msra.mxu0 0
    %959 = vmatprep.subr.bf16.mxu0 0
    %960 = vmatpush1.bf16.msra.mxu0 0
    %961 = vmatprep.mubr.bf16.mxu0 0
    %962 = vmatmul.mubr.bf16.gmra.mrb[0].mxu0 %v927
    %v963 = vpop.f32.mrb[0].mxu0
    %v964 = vadd.f32 0.0, %v963
    %v965 = vpop.f32.mrb[0].mxu0
    %v966 = vpop.f32.mrb[0].mxu0
    %v967 = vadd.f32 0.0, %v966
    %v968 = vpop.f32.mrb[0].mxu0
    %969 = vdwg.mxu0
    %970 = vrot.lane.b32.xlu0 %v163, 48
    %v971 = vpop.permute.xlu0 %970
    %v974 = vsel %vm269, %v922, 0
    %976 = vmatprep.subr.bf16.mxu0 0
    %977 = vmatpush1.bf16.msra.mxu0 %v971
    %978 = vmatprep.subr.bf16.mxu0 0
    %979 = vmatpush1.bf16.msra.mxu0 0
    %980 = vmatprep.subr.bf16.mxu0 0
    %981 = vmatpush1.bf16.msra.mxu0 0
    %982 = vmatprep.subr.bf16.mxu0 0
    %983 = vmatpush1.bf16.msra.mxu0 0
    %984 = vmatprep.subr.bf16.mxu0 0
    %985 = vmatpush1.bf16.msra.mxu0 0
    %986 = vmatprep.subr.bf16.mxu0 0
    %987 = vmatpush1.bf16.msra.mxu0 0
    %988 = vmatprep.subr.bf16.mxu0 0
    %989 = vmatpush1.bf16.msra.mxu0 0
    %990 = vmatprep.subr.bf16.mxu0 0
    %991 = vmatpush1.bf16.msra.mxu0 0
    %992 = vmatprep.subr.bf16.mxu0 0
    %993 = vmatpush1.bf16.msra.mxu0 0
    %994 = vmatprep.subr.bf16.mxu0 0
    %995 = vmatpush1.bf16.msra.mxu0 0
    %996 = vmatprep.subr.bf16.mxu0 0
    %997 = vmatpush1.bf16.msra.mxu0 0
    %998 = vmatprep.subr.bf16.mxu0 0
    %999 = vmatpush1.bf16.msra.mxu0 0
    %1000 = vmatprep.subr.bf16.mxu0 0
    %1001 = vmatpush1.bf16.msra.mxu0 0
    %1002 = vmatprep.subr.bf16.mxu0 0
    %1003 = vmatpush1.bf16.msra.mxu0 0
    %1004 = vmatprep.subr.bf16.mxu0 0
    %1005 = vmatpush1.bf16.msra.mxu0 0
    %1006 = vmatprep.subr.bf16.mxu0 0
    %1007 = vmatpush1.bf16.msra.mxu0 0
    %1008 = vmatprep.mubr.bf16.mxu0 0
    %1009 = vmatmul.mubr.bf16.gmra.mrb[0].mxu0 %v974
    %v1010 = vpop.f32.mrb[0].mxu0
    %v1011 = vadd.f32 0.0, %v1010
    %v1012 = vpop.f32.mrb[0].mxu0
    %v1013 = vpop.f32.mrb[0].mxu0
    %v1014 = vadd.f32 0.0, %v1013
    %v1015 = vpop.f32.mrb[0].mxu0
    %1016 = vdwg.mxu0
    %v1017 = vpack.c.bf16 %v967, %v964
    %v1018 = vpack.c.bf16 %v1014, %v1011
    %v1020 = vsel %vm171, %v1017, 0
    %v1023 = vsel %vm171, %v1018, 0
    %v1026 = vsel %vm664, %v166, 0
    %1028 = vmatprep.subr.bf16.mxu0 0
    %1029 = vmatpush1.bf16.msra.mxu0 %v1026
    %1030 = vmatprep.subr.bf16.mxu0 0
    %1031 = vmatpush1.bf16.msra.mxu0 0
    %1032 = vmatprep.subr.bf16.mxu0 0
    %1033 = vmatpush1.bf16.msra.mxu0 0
    %1034 = vmatprep.subr.bf16.mxu0 0
    %1035 = vmatpush1.bf16.msra.mxu0 0
    %1036 = vmatprep.subr.bf16.mxu0 0
    %1037 = vmatpush1.bf16.msra.mxu0 0
    %1038 = vmatprep.subr.bf16.mxu0 0
    %1039 = vmatpush1.bf16.msra.mxu0 0
    %1040 = vmatprep.subr.bf16.mxu0 0
    %1041 = vmatpush1.bf16.msra.mxu0 0
    %1042 = vmatprep.subr.bf16.mxu0 0
    %1043 = vmatpush1.bf16.msra.mxu0 0
    %1044 = vmatprep.subr.bf16.mxu0 0
    %1045 = vmatpush1.bf16.msra.mxu0 0
    %1046 = vmatprep.subr.bf16.mxu0 0
    %1047 = vmatpush1.bf16.msra.mxu0 0
    %1048 = vmatprep.subr.bf16.mxu0 0
    %1049 = vmatpush1.bf16.msra.mxu0 0
    %1050 = vmatprep.subr.bf16.mxu0 0
    %1051 = vmatpush1.bf16.msra.mxu0 0
    %1052 = vmatprep.subr.bf16.mxu0 0
    %1053 = vmatpush1.bf16.msra.mxu0 0
    %1054 = vmatprep.subr.bf16.mxu0 0
    %1055 = vmatpush1.bf16.msra.mxu0 0
    %1056 = vmatprep.subr.bf16.mxu0 0
    %1057 = vmatpush1.bf16.msra.mxu0 0
    %1058 = vmatprep.subr.bf16.mxu0 0
    %1059 = vmatpush1.bf16.msra.mxu0 0
    %1060 = vmatprep.mubr.bf16.mxu0 0
    %1061 = vmatmul.mubr.bf16.gmra.mrb[0].mxu0 %v1020
    %v1062 = vpop.f32.mrb[0].mxu0
    %v1063 = vadd.f32 0.0, %v1062
    %v1064 = vpop.f32.mrb[0].mxu0
    %v1065 = vpop.f32.mrb[0].mxu0
    %v1066 = vadd.f32 0.0, %v1065
    %v1067 = vpop.f32.mrb[0].mxu0
    %1068 = vmatprep.mubr.bf16.mxu0 0
    %1069 = vmatmul.mubr.bf16.gmra.mrb[0].mxu0 %v1023
    %v1070 = vpop.f32.mrb[0].mxu0
    %v1071 = vadd.f32 0.0, %v1070
    %v1072 = vpop.f32.mrb[0].mxu0
    %v1073 = vpop.f32.mrb[0].mxu0
    %v1074 = vadd.f32 0.0, %v1073
    %v1075 = vpop.f32.mrb[0].mxu0
    %1076 = vdwg.mxu0
    %v1077 = vadd.f32 %v761, %v1063
    %v1078 = vadd.f32 %v764, %v1066
    %v1079 = vadd.f32 %v769, %v1071
    %v1080 = vadd.f32 %v772, %v1074
    %1081 = vrot.lane.b32.xlu0 %v160, 104
    %v1082 = vpop.permute.xlu0 %1081
    %1083 = vrot.lane.b32.xlu0 %v162, 72
    %v1084 = vpop.permute.xlu0 %1083
    %v1086 = vsel %vm171, %v1082, 0
    %v1089 = vsel %vm171, %v1084, 0
    %1091 = vmatprep.subr.bf16.mxu0 0
    %1092 = vmatpush1.bf16.xpose.msra.mxu0 %v1089
    %1093 = vmatprep.subr.bf16.mxu0 0
    %1094 = vmatpush1.bf16.xpose.msra.mxu0 0
    %1095 = vmatprep.subr.bf16.mxu0 0
    %1096 = vmatpush1.bf16.xpose.msra.mxu0 0
    %1097 = vmatprep.subr.bf16.mxu0 0
    %1098 = vmatpush1.bf16.xpose.msra.mxu0 0
    %1099 = vmatprep.subr.bf16.mxu0 0
    %1100 = vmatpush1.bf16.xpose.msra.mxu0 0
    %1101 = vmatprep.subr.bf16.mxu0 0
    %1102 = vmatpush1.bf16.xpose.msra.mxu0 0
    %1103 = vmatprep.subr.bf16.mxu0 0
    %1104 = vmatpush1.bf16.xpose.msra.mxu0 0
    %1105 = vmatprep.subr.bf16.mxu0 0
    %1106 = vmatpush1.bf16.xpose.msra.mxu0 0
    %1107 = vmatprep.subr.bf16.mxu0 0
    %1108 = vmatpush1.bf16.xpose.msra.mxu0 0
    %1109 = vmatprep.subr.bf16.mxu0 0
    %1110 = vmatpush1.bf16.xpose.msra.mxu0 0
    %1111 = vmatprep.subr.bf16.mxu0 0
    %1112 = vmatpush1.bf16.xpose.msra.mxu0 0
    %1113 = vmatprep.subr.bf16.mxu0 0
    %1114 = vmatpush1.bf16.xpose.msra.mxu0 0
    %1115 = vmatprep.subr.bf16.mxu0 0
    %1116 = vmatpush1.bf16.xpose.msra.mxu0 0
    %1117 = vmatprep.subr.bf16.mxu0 0
    %1118 = vmatpush1.bf16.xpose.msra.mxu0 0
    %1119 = vmatprep.subr.bf16.mxu0 0
    %1120 = vmatpush1.bf16.xpose.msra.mxu0 0
    %1121 = vmatprep.subr.bf16.mxu0 0
    %1122 = vmatpush1.bf16.xpose.msra.mxu0 0
    %1123 = vmatprep.mubr.bf16.mxu0 0
    %1124 = vmatmul.mubr.bf16.gmra.mrb[0].mxu0 %v1086
    %v1125 = vpop.f32.mrb[0].mxu0
    %v1126 = vadd.f32 0.0, %v1125
    %v1127 = vpop.f32.mrb[0].mxu0
    %v1128 = vpop.f32.mrb[0].mxu0
    %v1129 = vadd.f32 0.0, %v1128
    %v1130 = vpop.f32.mrb[0].mxu0
    %1131 = vdwg.mxu0
    %1132 = vrot.lane.b32.xlu0 %v161, 104
    %v1133 = vpop.permute.xlu0 %1132
    %1134 = vrot.lane.b32.xlu0 %v163, 72
    %v1135 = vpop.permute.xlu0 %1134
    %v1137 = vsel %vm171, %v1133, 0
    %v1140 = vsel %vm171, %v1135, 0
    %1142 = vmatprep.subr.bf16.mxu0 0
    %1143 = vmatpush1.bf16.xpose.msra.mxu0 %v1140
    %1144 = vmatprep.subr.bf16.mxu0 0
    %1145 = vmatpush1.bf16.xpose.msra.mxu0 0
    %1146 = vmatprep.subr.bf16.mxu0 0
    %1147 = vmatpush1.bf16.xpose.msra.mxu0 0
    %1148 = vmatprep.subr.bf16.mxu0 0
    %1149 = vmatpush1.bf16.xpose.msra.mxu0 0
    %1150 = vmatprep.subr.bf16.mxu0 0
    %1151 = vmatpush1.bf16.xpose.msra.mxu0 0
    %1152 = vmatprep.subr.bf16.mxu0 0
    %1153 = vmatpush1.bf16.xpose.msra.mxu0 0
    %1154 = vmatprep.subr.bf16.mxu0 0
    %1155 = vmatpush1.bf16.xpose.msra.mxu0 0
    %1156 = vmatprep.subr.bf16.mxu0 0
    %1157 = vmatpush1.bf16.xpose.msra.mxu0 0
    %1158 = vmatprep.subr.bf16.mxu0 0
    %1159 = vmatpush1.bf16.xpose.msra.mxu0 0
    %1160 = vmatprep.subr.bf16.mxu0 0
    %1161 = vmatpush1.bf16.xpose.msra.mxu0 0
    %1162 = vmatprep.subr.bf16.mxu0 0
    %1163 = vmatpush1.bf16.xpose.msra.mxu0 0
    %1164 = vmatprep.subr.bf16.mxu0 0
    %1165 = vmatpush1.bf16.xpose.msra.mxu0 0
    %1166 = vmatprep.subr.bf16.mxu0 0
    %1167 = vmatpush1.bf16.xpose.msra.mxu0 0
    %1168 = vmatprep.subr.bf16.mxu0 0
    %1169 = vmatpush1.bf16.xpose.msra.mxu0 0
    %1170 = vmatprep.subr.bf16.mxu0 0
    %1171 = vmatpush1.bf16.xpose.msra.mxu0 0
    %1172 = vmatprep.subr.bf16.mxu0 0
    %1173 = vmatpush1.bf16.xpose.msra.mxu0 0
    %1174 = vmatprep.mubr.bf16.mxu0 0
    %1175 = vmatmul.mubr.bf16.gmra.mrb[0].mxu0 %v1137
    %v1176 = vpop.f32.mrb[0].mxu0
    %v1177 = vadd.f32 0.0, %v1176
    %v1178 = vpop.f32.mrb[0].mxu0
    %v1179 = vpop.f32.mrb[0].mxu0
    %v1180 = vadd.f32 0.0, %v1179
    %v1181 = vpop.f32.mrb[0].mxu0
    %1182 = vdwg.mxu0
    %v1183 = vsel %vm269, %v1126, -inf
    %1184 = vmax.xlane.f32.xlu0 %v1183
    %v1185 = vpop.xlane.xlu0 %1184
    %v1186 = vsel %vm269, %v1129, -inf
    %1187 = vmax.xlane.f32.xlu0 %v1186
    %v1188 = vpop.xlane.xlu0 %1187
    %v1189 = vsel %vm269, %v1177, -inf
    %1190 = vmax.xlane.f32.xlu0 %v1189
    %v1191 = vpop.xlane.xlu0 %1190
    %v1192 = vsel %vm269, %v1180, -inf
    %1193 = vmax.xlane.f32.xlu0 %v1192
    %v1194 = vpop.xlane.xlu0 %1193
    %v1195 = vsub.f32 %v1126, %v1185
    %v1196 = vsub.f32 %v1129, %v1188
    %v1197 = vsub.f32 %v1177, %v1191
    %v1198 = vsub.f32 %v1180, %v1194
    %v1199 = vmul.f32 %v1195, 1.442695
    %v1200 = vpow.pop %v1199
    %v1201 = vmul.f32 %v1196, 1.442695
    %v1202 = vpow.pop %v1201
    %v1203 = vmul.f32 %v1197, 1.442695
    %v1204 = vpow.pop %v1203
    %v1205 = vmul.f32 %v1198, 1.442695
    %v1206 = vpow.pop %v1205
    %v1207 = vsel %vm269, %v1200, 0.0
    %1208 = vadd.xlane.f32.xlu0 %v1207
    %v1209 = vpop.xlane.xlu0 %1208
    %v1210 = vsel %vm269, %v1202, 0.0
    %1211 = vadd.xlane.f32.xlu0 %v1210
    %v1212 = vpop.xlane.xlu0 %1211
    %v1213 = vsel %vm269, %v1204, 0.0
    %1214 = vadd.xlane.f32.xlu0 %v1213
    %v1215 = vpop.xlane.xlu0 %1214
    %v1216 = vsel %vm269, %v1206, 0.0
    %1217 = vadd.xlane.f32.xlu0 %v1216
    %v1218 = vpop.xlane.xlu0 %1217
    %v1219 = vrcp.pop %v1209
    %v1220 = vrcp.pop %v1212
    %v1221 = vrcp.pop %v1215
    %v1222 = vrcp.pop %v1218
    %v1223 = vmul.f32 %v1200, %v1219
    %v1224 = vmul.f32 %v1202, %v1220
    %v1225 = vmul.f32 %v1204, %v1221
    %v1226 = vmul.f32 %v1206, %v1222
    %v1227 = vpack.c.bf16 %v1224, %v1223
    %v1228 = vpack.c.bf16 %v1226, %v1225
    %1229 = vrot.lane.b32.xlu0 %v162, 40
    %v1230 = vpop.permute.xlu0 %1229
    %v1233 = vsel %vm269, %v1227, 0
    %1235 = vmatprep.subr.bf16.mxu0 0
    %1236 = vmatpush1.bf16.msra.mxu0 %v1230
    %1237 = vmatprep.subr.bf16.mxu0 0
    %1238 = vmatpush1.bf16.msra.mxu0 0
    %1239 = vmatprep.subr.bf16.mxu0 0
    %1240 = vmatpush1.bf16.msra.mxu0 0
    %1241 = vmatprep.subr.bf16.mxu0 0
    %1242 = vmatpush1.bf16.msra.mxu0 0
    %1243 = vmatprep.subr.bf16.mxu0 0
    %1244 = vmatpush1.bf16.msra.mxu0 0
    %1245 = vmatprep.subr.bf16.mxu0 0
    %1246 = vmatpush1.bf16.msra.mxu0 0
    %1247 = vmatprep.subr.bf16.mxu0 0
    %1248 = vmatpush1.bf16.msra.mxu0 0
    %1249 = vmatprep.subr.bf16.mxu0 0
    %1250 = vmatpush1.bf16.msra.mxu0 0
    %1251 = vmatprep.subr.bf16.mxu0 0
    %1252 = vmatpush1.bf16.msra.mxu0 0
    %1253 = vmatprep.subr.bf16.mxu0 0
    %1254 = vmatpush1.bf16.msra.mxu0 0
    %1255 = vmatprep.subr.bf16.mxu0 0
    %1256 = vmatpush1.bf16.msra.mxu0 0
    %1257 = vmatprep.subr.bf16.mxu0 0
    %1258 = vmatpush1.bf16.msra.mxu0 0
    %1259 = vmatprep.subr.bf16.mxu0 0
    %1260 = vmatpush1.bf16.msra.mxu0 0
    %1261 = vmatprep.subr.bf16.mxu0 0
    %1262 = vmatpush1.bf16.msra.mxu0 0
    %1263 = vmatprep.subr.bf16.mxu0 0
    %1264 = vmatpush1.bf16.msra.mxu0 0
    %1265 = vmatprep.subr.bf16.mxu0 0
    %1266 = vmatpush1.bf16.msra.mxu0 0
    %1267 = vmatprep.mubr.bf16.mxu0 0
    %1268 = vmatmul.mubr.bf16.gmra.mrb[0].mxu0 %v1233
    %v1269 = vpop.f32.mrb[0].mxu0
    %v1270 = vadd.f32 0.0, %v1269
    %v1271 = vpop.f32.mrb[0].mxu0
    %v1272 = vpop.f32.mrb[0].mxu0
    %v1273 = vadd.f32 0.0, %v1272
    %v1274 = vpop.f32.mrb[0].mxu0
    %1275 = vdwg.mxu0
    %1276 = vrot.lane.b32.xlu0 %v163, 40
    %v1277 = vpop.permute.xlu0 %1276
    %v1280 = vsel %vm269, %v1228, 0
    %1282 = vmatprep.subr.bf16.mxu0 0
    %1283 = vmatpush1.bf16.msra.mxu0 %v1277
    %1284 = vmatprep.subr.bf16.mxu0 0
    %1285 = vmatpush1.bf16.msra.mxu0 0
    %1286 = vmatprep.subr.bf16.mxu0 0
    %1287 = vmatpush1.bf16.msra.mxu0 0
    %1288 = vmatprep.subr.bf16.mxu0 0
    %1289 = vmatpush1.bf16.msra.mxu0 0
    %1290 = vmatprep.subr.bf16.mxu0 0
    %1291 = vmatpush1.bf16.msra.mxu0 0
    %1292 = vmatprep.subr.bf16.mxu0 0
    %1293 = vmatpush1.bf16.msra.mxu0 0
    %1294 = vmatprep.subr.bf16.mxu0 0
    %1295 = vmatpush1.bf16.msra.mxu0 0
    %1296 = vmatprep.subr.bf16.mxu0 0
    %1297 = vmatpush1.bf16.msra.mxu0 0
    %1298 = vmatprep.subr.bf16.mxu0 0
    %1299 = vmatpush1.bf16.msra.mxu0 0
    %1300 = vmatprep.subr.bf16.mxu0 0
    %1301 = vmatpush1.bf16.msra.mxu0 0
    %1302 = vmatprep.subr.bf16.mxu0 0
    %1303 = vmatpush1.bf16.msra.mxu0 0
    %1304 = vmatprep.subr.bf16.mxu0 0
    %1305 = vmatpush1.bf16.msra.mxu0 0
    %1306 = vmatprep.subr.bf16.mxu0 0
    %1307 = vmatpush1.bf16.msra.mxu0 0
    %1308 = vmatprep.subr.bf16.mxu0 0
    %1309 = vmatpush1.bf16.msra.mxu0 0
    %1310 = vmatprep.subr.bf16.mxu0 0
    %1311 = vmatpush1.bf16.msra.mxu0 0
    %1312 = vmatprep.subr.bf16.mxu0 0
    %1313 = vmatpush1.bf16.msra.mxu0 0
    %1314 = vmatprep.mubr.bf16.mxu0 0
    %1315 = vmatmul.mubr.bf16.gmra.mrb[0].mxu0 %v1280
    %v1316 = vpop.f32.mrb[0].mxu0
    %v1317 = vadd.f32 0.0, %v1316
    %v1318 = vpop.f32.mrb[0].mxu0
    %v1319 = vpop.f32.mrb[0].mxu0
    %v1320 = vadd.f32 0.0, %v1319
    %v1321 = vpop.f32.mrb[0].mxu0
    %1322 = vdwg.mxu0
    %v1323 = vpack.c.bf16 %v1273, %v1270
    %v1324 = vpack.c.bf16 %v1320, %v1317
    %v1326 = vsel %vm171, %v1323, 0
    %v1329 = vsel %vm171, %v1324, 0
    %v1332 = vsel %vm664, %v167, 0
    %1334 = vmatprep.subr.bf16.mxu0 0
    %1335 = vmatpush1.bf16.msra.mxu0 %v1332
    %1336 = vmatprep.subr.bf16.mxu0 0
    %1337 = vmatpush1.bf16.msra.mxu0 0
    %1338 = vmatprep.subr.bf16.mxu0 0
    %1339 = vmatpush1.bf16.msra.mxu0 0
    %1340 = vmatprep.subr.bf16.mxu0 0
    %1341 = vmatpush1.bf16.msra.mxu0 0
    %1342 = vmatprep.subr.bf16.mxu0 0
    %1343 = vmatpush1.bf16.msra.mxu0 0
    %1344 = vmatprep.subr.bf16.mxu0 0
    %1345 = vmatpush1.bf16.msra.mxu0 0
    %1346 = vmatprep.subr.bf16.mxu0 0
    %1347 = vmatpush1.bf16.msra.mxu0 0
    %1348 = vmatprep.subr.bf16.mxu0 0
    %1349 = vmatpush1.bf16.msra.mxu0 0
    %1350 = vmatprep.subr.bf16.mxu0 0
    %1351 = vmatpush1.bf16.msra.mxu0 0
    %1352 = vmatprep.subr.bf16.mxu0 0
    %1353 = vmatpush1.bf16.msra.mxu0 0
    %1354 = vmatprep.subr.bf16.mxu0 0
    %1355 = vmatpush1.bf16.msra.mxu0 0
    %1356 = vmatprep.subr.bf16.mxu0 0
    %1357 = vmatpush1.bf16.msra.mxu0 0
    %1358 = vmatprep.subr.bf16.mxu0 0
    %1359 = vmatpush1.bf16.msra.mxu0 0
    %1360 = vmatprep.subr.bf16.mxu0 0
    %1361 = vmatpush1.bf16.msra.mxu0 0
    %1362 = vmatprep.subr.bf16.mxu0 0
    %1363 = vmatpush1.bf16.msra.mxu0 0
    %1364 = vmatprep.subr.bf16.mxu0 0
    %1365 = vmatpush1.bf16.msra.mxu0 0
    %1366 = vmatprep.mubr.bf16.mxu0 0
    %1367 = vmatmul.mubr.bf16.gmra.mrb[0].mxu0 %v1326
    %v1368 = vpop.f32.mrb[0].mxu0
    %v1369 = vadd.f32 0.0, %v1368
    %v1370 = vpop.f32.mrb[0].mxu0
    %v1371 = vpop.f32.mrb[0].mxu0
    %v1372 = vadd.f32 0.0, %v1371
    %v1373 = vpop.f32.mrb[0].mxu0
    %1374 = vmatprep.mubr.bf16.mxu0 0
    %1375 = vmatmul.mubr.bf16.gmra.mrb[0].mxu0 %v1329
    %v1376 = vpop.f32.mrb[0].mxu0
    %v1377 = vadd.f32 0.0, %v1376
    %v1378 = vpop.f32.mrb[0].mxu0
    %v1379 = vpop.f32.mrb[0].mxu0
    %v1380 = vadd.f32 0.0, %v1379
    %v1381 = vpop.f32.mrb[0].mxu0
    %1382 = vdwg.mxu0
    %v1383 = vadd.f32 %v1077, %v1369
    %v1384 = vadd.f32 %v1078, %v1372
    %v1385 = vadd.f32 %v1079, %v1377
    %v1386 = vadd.f32 %v1080, %v1380
    %v1387 = vld [vmem:[%s4] sm:$0x1]
    %v1389 = vlaneseq
    %v1390 = vshrl.u32 %v1389, 7
    %v1391 = vsub.s32 0, %v1390
    %v1392 = vrot.slane %v1387, %v1391
    %v1394 = vadd.f32 %v1383, %v1392
    %v1395 = vadd.f32 %v1384, %v1392
    %v1396 = vadd.f32 %v1385, %v1392
    %v1397 = vadd.f32 %v1386, %v1392
    %1398 = vst.msk [vmem:[#allocation8] sm:$0xff] %vm100, %v1394
    %1399 = vst.msk [vmem:[#allocation8 + $0x8] sm:$0xff] %vm100, %v1395
    %1400 = vst.msk [vmem:[#allocation8 + $0x10] sm:$0xff] %vm100, %v1396
    %1401 = vst.msk [vmem:[#allocation8 + $0x18] sm:$0xff] %vm100, %v1397
    // Predicated region
    $region34: #{tpu_custom_call.1} parent=1 // pred_check
      _
    $region35: #{tpu_custom_call.1} parent=1 // pred_check_branch
      %1403 = sbr.rel (0) target = $region37
    $region36: #{tpu_custom_call.1} parent=1 // pred_region
      %s1405 = ssub.s32 512, 512
      %1406 = vsyncadd [#allocation4], %s1405
      %s1407 = sshll.u32 [#allocation8], 4
      %s1408 = int_to_ptr.vmem [resolvable:$true] %s1407
      %1413 = dma.vmem_to_hbm [thread:$0]  %s1408, 512, %s5, [#allocation4], 128, 128, 8
    $region37: #{tpu_custom_call.1} parent=1 // pred_fallthru
      _
    // Predicated region
    $region38: #{tpu_custom_call.1} parent=1 // pred_check
      _
    $region39: #{tpu_custom_call.1} parent=1 // pred_check_branch
      %1415 = sbr.rel (0) target = $region41
    $region40: #{tpu_custom_call.1} parent=1 // pred_region
      %1416 = dma.done [#allocation4], 512
    $region41: #{tpu_custom_call.1} parent=1 // pred_fallthru
      _
    %1417 = vsyncpa [#allocation3], 1
    %1418 = vsyncpa [#allocation6], 1
    %1419 = vsyncpa [#allocation4], 1

</llo_original>
